<compile_context>
chip_gen: v7x
topology: tpu7x:2x2x1
jax: 0.10.0
libtpu: 0.0.40
codegen_flags: <defaults>
</compile_context>

<pallas_src>
import jax
import jax.numpy as jnp
from jax.experimental import pallas as pl
from jax.experimental.pallas import tpu as pltpu

# MLP layer sizes from the PyTorch module.
SIZES = [512, 256, 128, 64, 32, 16, 1]
ACTS = ["relu", "sigmoid", "sigmoid", "sigmoid", "sigmoid", "relu"]


def _round_up(n, m):
    return ((n + m - 1) // m) * m


# Lane-padded feature sizes (every feature axis a multiple of 128).
PAD_SIZES = [SIZES[0]] + [_round_up(s, 128) for s in SIZES[1:]]
# -> [512, 256, 128, 128, 128, 128, 128]


def _mlp_kernel(x_ref,
                w1_ref, b1_ref,
                w2_ref, b2_ref,
                w3_ref, b3_ref,
                w4_ref, b4_ref,
                w5_ref, b5_ref,
                w6_ref, b6_ref,
                out_ref):
    """Fully fused 6-layer MLP on one (TB, 512) activation tile."""
    h = x_ref[...]  # bf16 (TB, 512)

    def layer(h_bf16, w_ref, b_ref, act):
        # bf16 x bf16 matmul on the MXU, f32 accumulation.
        z = jnp.dot(h_bf16, w_ref[...], preferred_element_type=jnp.float32)
        z = z + b_ref[...]                       # f32 bias add (VPU)
        if act == "relu":
            return jnp.maximum(z, 0.0)           # f32 (VPU)
        return jax.nn.sigmoid(z)                 # f32 (EUP)

    h = layer(h, w1_ref, b1_ref, "relu").astype(jnp.bfloat16)
    h = layer(h, w2_ref, b2_ref, "sigmoid").astype(jnp.bfloat16)
    h = layer(h, w3_ref, b3_ref, "sigmoid").astype(jnp.bfloat16)
    h = layer(h, w4_ref, b4_ref, "sigmoid").astype(jnp.bfloat16)
    h = layer(h, w5_ref, b5_ref, "sigmoid").astype(jnp.bfloat16)
    out_ref[...] = layer(h, w6_ref, b6_ref, "relu")  # f32, lane-dense (TB, 128)


def _pad2d(a, rows, cols):
    return jnp.pad(a, ((0, rows - a.shape[0]), (0, cols - a.shape[1])))


def _pick_tile(batch):
    """Adaptive batch tile: one step for small batches, 256-row tiles otherwise."""
    if batch <= 512:
        return max(16, _round_up(batch, 16))   # single grid step, 16-aligned (bf16 sublanes)
    return 256


@jax.jit
def neural_network_forward(x, params):
    """x: [B, 512] float32. params: list of (W [in,out] f32, b [1,out] f32)."""
    B, D = x.shape
    assert D == SIZES[0]

    tb = _pick_tile(B)
    n_tiles = pl.cdiv(B, tb)
    b_pad = n_tiles * tb

    # Batch-pad and cast activations to bf16 for the MXU.
    x_p = _pad2d(x, b_pad, D).astype(jnp.bfloat16)

    flat_params = []
    in_specs = [pl.BlockSpec((tb, D), lambda i: (i, 0))]
    for li, (w, b) in enumerate(params):
        in_p, out_p = PAD_SIZES[li], PAD_SIZES[li + 1]
        w_p = _pad2d(w, in_p, out_p).astype(jnp.bfloat16)   # zero-padded bf16
        b_p = _pad2d(b, 1, out_p).astype(jnp.float32)       # zero-padded f32
        flat_params.extend([w_p, b_p])
        # Constant index maps: weights/biases stay VMEM-resident across grid steps.
        in_specs.append(pl.BlockSpec((in_p, out_p), lambda i: (0, 0)))
        in_specs.append(pl.BlockSpec((1, out_p), lambda i: (0, 0)))

    out_lanes = PAD_SIZES[-1]
    out = pl.pallas_call(
        _mlp_kernel,
        out_shape=jax.ShapeDtypeStruct((b_pad, out_lanes), jnp.float32),
        grid=(n_tiles,),
        in_specs=in_specs,
        out_specs=pl.BlockSpec((tb, out_lanes), lambda i: (i, 0)),
        compiler_params=pltpu.CompilerParams(
            dimension_semantics=("parallel",)),
    )(x_p, *flat_params)

    # Drop batch padding and the zero-padded output lanes.
    return out[:B, :SIZES[-1]]


def init_params(key):
    """Deterministic PyTorch-style (uniform +/- 1/sqrt(fan_in)) initialization."""
    params = []
    for i in range(len(SIZES) - 1):
        fan_in, fan_out = SIZES[i], SIZES[i + 1]
        key, kw, kb = jax.random.split(key, 3)
        bound = 1.0 / (fan_in ** 0.5)
        w = jax.random.uniform(kw, (fan_in, fan_out), jnp.float32, -bound, bound)
        b = jax.random.uniform(kb, (1, fan_out), jnp.float32, -bound, bound)
        params.append((w, b))
    return params


def reference_forward_f32(x, params):
    """Pure-f32 reference matching the PyTorch forward exactly."""
    h = x
    for (w, b), act in zip(params, ACTS):
        h = h @ w + b
        h = jnp.maximum(h, 0.0) if act == "relu" else jax.nn.sigmoid(h)
    return h


def reference_forward_bf16(x, params):
    """Reference with the same bf16 quantization of x/W/activations as the kernel."""
    h = x.astype(jnp.bfloat16).astype(jnp.float32)
    for (w, b), act in zip(params, ACTS):
        w_q = w.astype(jnp.bfloat16).astype(jnp.float32)
        h = h @ w_q + b
        h = jnp.maximum(h, 0.0) if act == "relu" else jax.nn.sigmoid(h)
        h = h.astype(jnp.bfloat16).astype(jnp.float32)
    return h


if __name__ == "__main__":
    key = jax.random.PRNGKey(0)
    key, kx1, kx2 = jax.random.split(key, 3)
    params = init_params(key)

    ok = True
    # Small batch: single grid step, no wasted padding rows.
    # Larger batch: multi-step grid with batch padding (600 -> 3 x 256).
    for kx, B in ((kx1, 64), (kx2, 600)):
        x = jax.random.normal(kx, (B, SIZES[0]), jnp.float32)
        out = jax.block_until_ready(neural_network_forward(x, params))
        assert out.shape == (B, 1), out.shape

        # Tight check vs. a reference with matching bf16 quantization ...
        ref_bf16 = reference_forward_bf16(x, params)
        ok &= bool(jnp.allclose(out, ref_bf16, atol=5e-3, rtol=5e-3))
        # ... and a looser check vs. the exact f32 PyTorch semantics.
        ref_f32 = reference_forward_f32(x, params)
        ok &= bool(jnp.allclose(out, ref_f32, atol=3e-2, rtol=3e-2))

    assert ok, "kernel output mismatch vs reference"
    print("KERNEL_OK")
</pallas_src>

<mosaic_0001>
module attributes {stable_mosaic.version = 11 : i64} {
  func.func @_mlp_kernel(%arg0: i32, %arg1: memref<64x512xbf16, #tpu.memory_space<vmem>>, %arg2: memref<512x256xbf16, #tpu.memory_space<vmem>>, %arg3: memref<1x256xf32, #tpu.memory_space<vmem>>, %arg4: memref<256x128xbf16, #tpu.memory_space<vmem>>, %arg5: memref<1x128xf32, #tpu.memory_space<vmem>>, %arg6: memref<128x128xbf16, #tpu.memory_space<vmem>>, %arg7: memref<1x128xf32, #tpu.memory_space<vmem>>, %arg8: memref<128x128xbf16, #tpu.memory_space<vmem>>, %arg9: memref<1x128xf32, #tpu.memory_space<vmem>>, %arg10: memref<128x128xbf16, #tpu.memory_space<vmem>>, %arg11: memref<1x128xf32, #tpu.memory_space<vmem>>, %arg12: memref<128x128xbf16, #tpu.memory_space<vmem>>, %arg13: memref<1x128xf32, #tpu.memory_space<vmem>>, %arg14: memref<64x128xf32, #tpu.memory_space<vmem>>) attributes {dimension_semantics = [#tpu.dimension_semantics<parallel>], iteration_bounds = array<i64: 1>, scalar_prefetch = 0 : i64, scratch_operands = 0 : i64, tpu.core_type = #tpu.core_type<tc>, window_params = [{transform_indices = @transform_0, window_bounds = array<i64: 64, 512>}, {pipeline_mode = #tpu.pipeline_mode<synchronous>, transform_indices = @transform_1, window_bounds = array<i64: 512, 256>}, {pipeline_mode = #tpu.pipeline_mode<synchronous>, transform_indices = @transform_2, window_bounds = array<i64: 1, 256>}, {pipeline_mode = #tpu.pipeline_mode<synchronous>, transform_indices = @transform_3, window_bounds = array<i64: 256, 128>}, {pipeline_mode = #tpu.pipeline_mode<synchronous>, transform_indices = @transform_4, window_bounds = array<i64: 1, 128>}, {pipeline_mode = #tpu.pipeline_mode<synchronous>, transform_indices = @transform_5, window_bounds = array<i64: 128, 128>}, {pipeline_mode = #tpu.pipeline_mode<synchronous>, transform_indices = @transform_6, window_bounds = array<i64: 1, 128>}, {pipeline_mode = #tpu.pipeline_mode<synchronous>, transform_indices = @transform_7, window_bounds = array<i64: 128, 128>}, {pipeline_mode = #tpu.pipeline_mode<synchronous>, transform_indices = @transform_8, window_bounds = array<i64: 1, 128>}, {pipeline_mode = #tpu.pipeline_mode<synchronous>, transform_indices = @transform_9, window_bounds = array<i64: 128, 128>}, {pipeline_mode = #tpu.pipeline_mode<synchronous>, transform_indices = @transform_10, window_bounds = array<i64: 1, 128>}, {pipeline_mode = #tpu.pipeline_mode<synchronous>, transform_indices = @transform_11, window_bounds = array<i64: 128, 128>}, {pipeline_mode = #tpu.pipeline_mode<synchronous>, transform_indices = @transform_12, window_bounds = array<i64: 1, 128>}, {transform_indices = @transform_13, window_bounds = array<i64: 64, 128>}]} {
    %c0 = arith.constant 0 : index
    %c0_0 = arith.constant 0 : index
    %0 = vector.load %arg1[%c0, %c0_0] : memref<64x512xbf16, #tpu.memory_space<vmem>>, vector<64x512xbf16>
    %c0_1 = arith.constant 0 : index
    %c0_2 = arith.constant 0 : index
    %1 = vector.load %arg2[%c0_1, %c0_2] : memref<512x256xbf16, #tpu.memory_space<vmem>>, vector<512x256xbf16>
    %cst = arith.constant dense<0.000000e+00> : vector<64x256xf32>
    %2 = tpu.matmul %0, %1, %cst {dimension_numbers = #tpu.dot_dimension_numbers<[1], [0], [0], [1], [0, 0, 1, 1], [], []>} : vector<64x512xbf16>, vector<512x256xbf16>, vector<64x256xf32> -> vector<64x256xf32>
    %c0_3 = arith.constant 0 : index
    %c0_4 = arith.constant 0 : index
    %3 = vector.load %arg3[%c0_3, %c0_4] : memref<1x256xf32, #tpu.memory_space<vmem>>, vector<1x256xf32>
    %4 = vector.broadcast %3 : vector<1x256xf32> to vector<64x256xf32>
    %5 = arith.addf %2, %4 : vector<64x256xf32>
    %cst_5 = arith.constant 0.000000e+00 : f32
    %6 = vector.broadcast %cst_5 : f32 to vector<64x256xf32>
    %7 = arith.maximumf %5, %6 : vector<64x256xf32>
    %8 = arith.truncf %7 : vector<64x256xf32> to vector<64x256xbf16>
    %c0_6 = arith.constant 0 : index
    %c0_7 = arith.constant 0 : index
    %9 = vector.load %arg4[%c0_6, %c0_7] : memref<256x128xbf16, #tpu.memory_space<vmem>>, vector<256x128xbf16>
    %cst_8 = arith.constant dense<0.000000e+00> : vector<64x128xf32>
    %10 = tpu.matmul %8, %9, %cst_8 {dimension_numbers = #tpu.dot_dimension_numbers<[1], [0], [0], [1], [0, 0, 1, 1], [], []>} : vector<64x256xbf16>, vector<256x128xbf16>, vector<64x128xf32> -> vector<64x128xf32>
    %c0_9 = arith.constant 0 : index
    %c0_10 = arith.constant 0 : index
    %11 = vector.load %arg5[%c0_9, %c0_10] : memref<1x128xf32, #tpu.memory_space<vmem>>, vector<1x128xf32>
    %12 = vector.broadcast %11 : vector<1x128xf32> to vector<64x128xf32>
    %13 = arith.addf %10, %12 : vector<64x128xf32>
    %14 = arith.negf %13 : vector<64x128xf32>
    %15 = math.exp %14 : vector<64x128xf32>
    %cst_11 = arith.constant 1.000000e+00 : f32
    %16 = vector.broadcast %cst_11 : f32 to vector<64x128xf32>
    %17 = arith.addf %16, %15 : vector<64x128xf32>
    %18 = arith.divf %16, %17 : vector<64x128xf32>
    %19 = arith.truncf %18 : vector<64x128xf32> to vector<64x128xbf16>
    %c0_12 = arith.constant 0 : index
    %c0_13 = arith.constant 0 : index
    %20 = vector.load %arg6[%c0_12, %c0_13] : memref<128x128xbf16, #tpu.memory_space<vmem>>, vector<128x128xbf16>
    %cst_14 = arith.constant dense<0.000000e+00> : vector<64x128xf32>
    %21 = tpu.matmul %19, %20, %cst_14 {dimension_numbers = #tpu.dot_dimension_numbers<[1], [0], [0], [1], [0, 0, 1, 1], [], []>} : vector<64x128xbf16>, vector<128x128xbf16>, vector<64x128xf32> -> vector<64x128xf32>
    %c0_15 = arith.constant 0 : index
    %c0_16 = arith.constant 0 : index
    %22 = vector.load %arg7[%c0_15, %c0_16] : memref<1x128xf32, #tpu.memory_space<vmem>>, vector<1x128xf32>
    %23 = vector.broadcast %22 : vector<1x128xf32> to vector<64x128xf32>
    %24 = arith.addf %21, %23 : vector<64x128xf32>
    %25 = arith.negf %24 : vector<64x128xf32>
    %26 = math.exp %25 : vector<64x128xf32>
    %cst_17 = arith.constant 1.000000e+00 : f32
    %27 = vector.broadcast %cst_17 : f32 to vector<64x128xf32>
    %28 = arith.addf %27, %26 : vector<64x128xf32>
    %29 = arith.divf %27, %28 : vector<64x128xf32>
    %30 = arith.truncf %29 : vector<64x128xf32> to vector<64x128xbf16>
    %c0_18 = arith.constant 0 : index
    %c0_19 = arith.constant 0 : index
    %31 = vector.load %arg8[%c0_18, %c0_19] : memref<128x128xbf16, #tpu.memory_space<vmem>>, vector<128x128xbf16>
    %cst_20 = arith.constant dense<0.000000e+00> : vector<64x128xf32>
    %32 = tpu.matmul %30, %31, %cst_20 {dimension_numbers = #tpu.dot_dimension_numbers<[1], [0], [0], [1], [0, 0, 1, 1], [], []>} : vector<64x128xbf16>, vector<128x128xbf16>, vector<64x128xf32> -> vector<64x128xf32>
    %c0_21 = arith.constant 0 : index
    %c0_22 = arith.constant 0 : index
    %33 = vector.load %arg9[%c0_21, %c0_22] : memref<1x128xf32, #tpu.memory_space<vmem>>, vector<1x128xf32>
    %34 = vector.broadcast %33 : vector<1x128xf32> to vector<64x128xf32>
    %35 = arith.addf %32, %34 : vector<64x128xf32>
    %36 = arith.negf %35 : vector<64x128xf32>
    %37 = math.exp %36 : vector<64x128xf32>
    %cst_23 = arith.constant 1.000000e+00 : f32
    %38 = vector.broadcast %cst_23 : f32 to vector<64x128xf32>
    %39 = arith.addf %38, %37 : vector<64x128xf32>
    %40 = arith.divf %38, %39 : vector<64x128xf32>
    %41 = arith.truncf %40 : vector<64x128xf32> to vector<64x128xbf16>
    %c0_24 = arith.constant 0 : index
    %c0_25 = arith.constant 0 : index
    %42 = vector.load %arg10[%c0_24, %c0_25] : memref<128x128xbf16, #tpu.memory_space<vmem>>, vector<128x128xbf16>
    %cst_26 = arith.constant dense<0.000000e+00> : vector<64x128xf32>
    %43 = tpu.matmul %41, %42, %cst_26 {dimension_numbers = #tpu.dot_dimension_numbers<[1], [0], [0], [1], [0, 0, 1, 1], [], []>} : vector<64x128xbf16>, vector<128x128xbf16>, vector<64x128xf32> -> vector<64x128xf32>
    %c0_27 = arith.constant 0 : index
    %c0_28 = arith.constant 0 : index
    %44 = vector.load %arg11[%c0_27, %c0_28] : memref<1x128xf32, #tpu.memory_space<vmem>>, vector<1x128xf32>
    %45 = vector.broadcast %44 : vector<1x128xf32> to vector<64x128xf32>
    %46 = arith.addf %43, %45 : vector<64x128xf32>
    %47 = arith.negf %46 : vector<64x128xf32>
    %48 = math.exp %47 : vector<64x128xf32>
    %cst_29 = arith.constant 1.000000e+00 : f32
    %49 = vector.broadcast %cst_29 : f32 to vector<64x128xf32>
    %50 = arith.addf %49, %48 : vector<64x128xf32>
    %51 = arith.divf %49, %50 : vector<64x128xf32>
    %52 = arith.truncf %51 : vector<64x128xf32> to vector<64x128xbf16>
    %c0_30 = arith.constant 0 : index
    %c0_31 = arith.constant 0 : index
    %53 = vector.load %arg12[%c0_30, %c0_31] : memref<128x128xbf16, #tpu.memory_space<vmem>>, vector<128x128xbf16>
    %cst_32 = arith.constant dense<0.000000e+00> : vector<64x128xf32>
    %54 = tpu.matmul %52, %53, %cst_32 {dimension_numbers = #tpu.dot_dimension_numbers<[1], [0], [0], [1], [0, 0, 1, 1], [], []>} : vector<64x128xbf16>, vector<128x128xbf16>, vector<64x128xf32> -> vector<64x128xf32>
    %c0_33 = arith.constant 0 : index
    %c0_34 = arith.constant 0 : index
    %55 = vector.load %arg13[%c0_33, %c0_34] : memref<1x128xf32, #tpu.memory_space<vmem>>, vector<1x128xf32>
    %56 = vector.broadcast %55 : vector<1x128xf32> to vector<64x128xf32>
    %57 = arith.addf %54, %56 : vector<64x128xf32>
    %cst_35 = arith.constant 0.000000e+00 : f32
    %58 = vector.broadcast %cst_35 : f32 to vector<64x128xf32>
    %59 = arith.maximumf %57, %58 : vector<64x128xf32>
    %c0_36 = arith.constant 0 : index
    %c0_37 = arith.constant 0 : index
    %60 = vector.load %arg14[%c0_36, %c0_37] : memref<64x128xf32, #tpu.memory_space<vmem>>, vector<64x128xf32>
    tpu.vector_store %arg14[%c0_36, %c0_37], %59 {strides = array<i32>} : memref<64x128xf32, #tpu.memory_space<vmem>>, vector<64x128xf32>,
    return
  }
  func.func @transform_0(%arg0: i32) -> (i32, i32) {
    %c0_i32 = arith.constant 0 : i32
    %c0_i32_0 = arith.constant 0 : i32
    return %arg0, %c0_i32 : i32, i32
  }
  func.func @transform_1(%arg0: i32) -> (i32, i32) {
    %c0_i32 = arith.constant 0 : i32
    %c0_i32_0 = arith.constant 0 : i32
    %c0_i32_1 = arith.constant 0 : i32
    return %c0_i32, %c0_i32_0 : i32, i32
  }
  func.func @transform_2(%arg0: i32) -> (i32, i32) {
    %c0_i32 = arith.constant 0 : i32
    %c0_i32_0 = arith.constant 0 : i32
    %c0_i32_1 = arith.constant 0 : i32
    return %c0_i32, %c0_i32_0 : i32, i32
  }
  func.func @transform_3(%arg0: i32) -> (i32, i32) {
    %c0_i32 = arith.constant 0 : i32
    %c0_i32_0 = arith.constant 0 : i32
    %c0_i32_1 = arith.constant 0 : i32
    return %c0_i32, %c0_i32_0 : i32, i32
  }
  func.func @transform_4(%arg0: i32) -> (i32, i32) {
    %c0_i32 = arith.constant 0 : i32
    %c0_i32_0 = arith.constant 0 : i32
    %c0_i32_1 = arith.constant 0 : i32
    return %c0_i32, %c0_i32_0 : i32, i32
  }
  func.func @transform_5(%arg0: i32) -> (i32, i32) {
    %c0_i32 = arith.constant 0 : i32
    %c0_i32_0 = arith.constant 0 : i32
    %c0_i32_1 = arith.constant 0 : i32
    return %c0_i32, %c0_i32_0 : i32, i32
  }
  func.func @transform_6(%arg0: i32) -> (i32, i32) {
    %c0_i32 = arith.constant 0 : i32
    %c0_i32_0 = arith.constant 0 : i32
    %c0_i32_1 = arith.constant 0 : i32
    return %c0_i32, %c0_i32_0 : i32, i32
  }
  func.func @transform_7(%arg0: i32) -> (i32, i32) {
    %c0_i32 = arith.constant 0 : i32
    %c0_i32_0 = arith.constant 0 : i32
    %c0_i32_1 = arith.constant 0 : i32
    return %c0_i32, %c0_i32_0 : i32, i32
  }
  func.func @transform_8(%arg0: i32) -> (i32, i32) {
    %c0_i32 = arith.constant 0 : i32
    %c0_i32_0 = arith.constant 0 : i32
    %c0_i32_1 = arith.constant 0 : i32
    return %c0_i32, %c0_i32_0 : i32, i32
  }
  func.func @transform_9(%arg0: i32) -> (i32, i32) {
    %c0_i32 = arith.constant 0 : i32
    %c0_i32_0 = arith.constant 0 : i32
    %c0_i32_1 = arith.constant 0 : i32
    return %c0_i32, %c0_i32_0 : i32, i32
  }
  func.func @transform_10(%arg0: i32) -> (i32, i32) {
    %c0_i32 = arith.constant 0 : i32
    %c0_i32_0 = arith.constant 0 : i32
    %c0_i32_1 = arith.constant 0 : i32
    return %c0_i32, %c0_i32_0 : i32, i32
  }
  func.func @transform_11(%arg0: i32) -> (i32, i32) {
    %c0_i32 = arith.constant 0 : i32
    %c0_i32_0 = arith.constant 0 : i32
    %c0_i32_1 = arith.constant 0 : i32
    return %c0_i32, %c0_i32_0 : i32, i32
  }
  func.func @transform_12(%arg0: i32) -> (i32, i32) {
    %c0_i32 = arith.constant 0 : i32
    %c0_i32_0 = arith.constant 0 : i32
    %c0_i32_1 = arith.constant 0 : i32
    return %c0_i32, %c0_i32_0 : i32, i32
  }
  func.func @transform_13(%arg0: i32) -> (i32, i32) {
    %c0_i32 = arith.constant 0 : i32
    %c0_i32_0 = arith.constant 0 : i32
    return %arg0, %c0_i32 : i32, i32
  }
}

</mosaic_0001>

<llo_original>
// kernel: neural_network_forward.1
$region0: #{neural_network_forward.1}
  #allocation0 [shape = 'u32[]', space=smem, size = 0x4, offset = 0x4, fixed_abs, tag = 'smem constant byte address 0x4 - core index']
  #allocation1 [shape = 'u32[144,128]{1,0:T(1,128)}', space=vmem, size = 0x12000, scoped, tag = 'internal scratch']
  %s0 = inlined_call_operand.vmem [shape: bf16[64,512], index: 0, kind: input, shape index: {}]
  %s1 = inlined_call_operand.vmem [shape: bf16[512,256], index: 1, kind: input, shape index: {}]
  %s2 = inlined_call_operand.vmem [shape: f32[1,256], index: 2, kind: input, shape index: {}]
  %s3 = inlined_call_operand.vmem [shape: bf16[256,128], index: 3, kind: input, shape index: {}]
  %s4 = inlined_call_operand.vmem [shape: f32[1,128], index: 4, kind: input, shape index: {}]
  %s5 = inlined_call_operand.vmem [shape: bf16[128,128], index: 5, kind: input, shape index: {}]
  %s6 = inlined_call_operand.vmem [shape: f32[1,128], index: 6, kind: input, shape index: {}]
  %s7 = inlined_call_operand.vmem [shape: bf16[128,128], index: 7, kind: input, shape index: {}]
  %s8 = inlined_call_operand.vmem [shape: f32[1,128], index: 8, kind: input, shape index: {}]
  %s9 = inlined_call_operand.vmem [shape: bf16[128,128], index: 9, kind: input, shape index: {}]
  %s10 = inlined_call_operand.vmem [shape: f32[1,128], index: 10, kind: input, shape index: {}]
  %s11 = inlined_call_operand.vmem [shape: bf16[128,128], index: 11, kind: input, shape index: {}]
  %s12 = inlined_call_operand.vmem [shape: f32[1,128], index: 12, kind: input, shape index: {}]
  %s13 = inlined_call_operand.vmem [shape: f32[64,128], index: 13, kind: output, shape index: {}]
  %s14 = sld [smem:[#allocation0]]
  $region62: #{neural_network_forward.1} parent=0
    _
  %s16 = ssub.s32 1, %s14
  %s17 = scalar_select 0, %s16, %s14
  // Predicated region
  $region2: #{neural_network_forward.1} parent=0 // pred_check
    _
  $region3: #{neural_network_forward.1} parent=0 // pred_check_branch
    %19 = sbr.rel (0) target = $region5
  $region4: #{neural_network_forward.1} parent=0 // pred_region
    _
  $region5: #{neural_network_forward.1} parent=0 // pred_fallthru
    _
  // Predicated region
  $region6: #{neural_network_forward.1} parent=0 // pred_check
    _
  $region7: #{neural_network_forward.1} parent=0 // pred_check_branch
    %21 = sbr.rel (0) target = $region9
  $region8: #{neural_network_forward.1} parent=0 // pred_region
    _
  $region9: #{neural_network_forward.1} parent=0 // pred_fallthru
    _
  // Predicated region
  $region10: #{neural_network_forward.1} parent=0 // pred_check
    _
  $region11: #{neural_network_forward.1} parent=0 // pred_check_branch
    %23 = sbr.rel (0) target = $region13
  $region12: #{neural_network_forward.1} parent=0 // pred_region
    _
  $region13: #{neural_network_forward.1} parent=0 // pred_fallthru
    _
  // Predicated region
  $region14: #{neural_network_forward.1} parent=0 // pred_check
    _
  $region15: #{neural_network_forward.1} parent=0 // pred_check_branch
    %25 = sbr.rel (0) target = $region17
  $region16: #{neural_network_forward.1} parent=0 // pred_region
    _
  $region17: #{neural_network_forward.1} parent=0 // pred_fallthru
    _
  // Predicated region
  $region18: #{neural_network_forward.1} parent=0 // pred_check
    _
  $region19: #{neural_network_forward.1} parent=0 // pred_check_branch
    %27 = sbr.rel (0) target = $region21
  $region20: #{neural_network_forward.1} parent=0 // pred_region
    _
  $region21: #{neural_network_forward.1} parent=0 // pred_fallthru
    _
  // Predicated region
  $region22: #{neural_network_forward.1} parent=0 // pred_check
    _
  $region23: #{neural_network_forward.1} parent=0 // pred_check_branch
    %29 = sbr.rel (0) target = $region25
  $region24: #{neural_network_forward.1} parent=0 // pred_region
    _
  $region25: #{neural_network_forward.1} parent=0 // pred_fallthru
    _
  // Predicated region
  $region26: #{neural_network_forward.1} parent=0 // pred_check
    _
  $region27: #{neural_network_forward.1} parent=0 // pred_check_branch
    %31 = sbr.rel (0) target = $region29
  $region28: #{neural_network_forward.1} parent=0 // pred_region
    _
  $region29: #{neural_network_forward.1} parent=0 // pred_fallthru
    _
  // Predicated region
  $region30: #{neural_network_forward.1} parent=0 // pred_check
    _
  $region31: #{neural_network_forward.1} parent=0 // pred_check_branch
    %33 = sbr.rel (0) target = $region33
  $region32: #{neural_network_forward.1} parent=0 // pred_region
    _
  $region33: #{neural_network_forward.1} parent=0 // pred_fallthru
    _
  // Predicated region
  $region34: #{neural_network_forward.1} parent=0 // pred_check
    _
  $region35: #{neural_network_forward.1} parent=0 // pred_check_branch
    %35 = sbr.rel (0) target = $region37
  $region36: #{neural_network_forward.1} parent=0 // pred_region
    _
  $region37: #{neural_network_forward.1} parent=0 // pred_fallthru
    _
  // Predicated region
  $region38: #{neural_network_forward.1} parent=0 // pred_check
    _
  $region39: #{neural_network_forward.1} parent=0 // pred_check_branch
    %37 = sbr.rel (0) target = $region41
  $region40: #{neural_network_forward.1} parent=0 // pred_region
    _
  $region41: #{neural_network_forward.1} parent=0 // pred_fallthru
    _
  // Predicated region
  $region42: #{neural_network_forward.1} parent=0 // pred_check
    _
  $region43: #{neural_network_forward.1} parent=0 // pred_check_branch
    %39 = sbr.rel (0) target = $region45
  $region44: #{neural_network_forward.1} parent=0 // pred_region
    _
  $region45: #{neural_network_forward.1} parent=0 // pred_fallthru
    _
  // Predicated region
  $region46: #{neural_network_forward.1} parent=0 // pred_check
    _
  $region47: #{neural_network_forward.1} parent=0 // pred_check_branch
    %41 = sbr.rel (0) target = $region49
  $region48: #{neural_network_forward.1} parent=0 // pred_region
    _
  $region49: #{neural_network_forward.1} parent=0 // pred_fallthru
    _
  // Predicated region
  $region50: #{neural_network_forward.1} parent=0 // pred_check
    _
  $region51: #{neural_network_forward.1} parent=0 // pred_check_branch
    %43 = sbr.rel (0) target = $region53
  $region52: #{neural_network_forward.1} parent=0 // pred_region
    _
  $region53: #{neural_network_forward.1} parent=0 // pred_fallthru
    _
  %v45 = vld [vmem:[%s0] sm:$0xff]
  %v46 = vld [vmem:[%s0 + $0x8] sm:$0xff]
  %v47 = vld [vmem:[%s0 + $0x10] sm:$0xff]
  %v48 = vld [vmem:[%s0 + $0x18] sm:$0xff]
  %v49 = vld [vmem:[%s0 + $0x20] sm:$0xff]
  %v50 = vld [vmem:[%s0 + $0x28] sm:$0xff]
  %v51 = vld [vmem:[%s0 + $0x30] sm:$0xff]
  %v52 = vld [vmem:[%s0 + $0x38] sm:$0xff]
  %v53 = vld [vmem:[%s0 + $0x40] sm:$0xff]
  %v54 = vld [vmem:[%s0 + $0x48] sm:$0xff]
  %v55 = vld [vmem:[%s0 + $0x50] sm:$0xff]
  %v56 = vld [vmem:[%s0 + $0x58] sm:$0xff]
  %v57 = vld [vmem:[%s0 + $0x60] sm:$0xff]
  %v58 = vld [vmem:[%s0 + $0x68] sm:$0xff]
  %v59 = vld [vmem:[%s0 + $0x70] sm:$0xff]
  %v60 = vld [vmem:[%s0 + $0x78] sm:$0xff]
  %v61 = vld [vmem:[%s1] sm:$0xff]
  %v62 = vld [vmem:[%s1 + $0x8] sm:$0xff]
  %v63 = vld [vmem:[%s1 + $0x10] sm:$0xff]
  %v64 = vld [vmem:[%s1 + $0x18] sm:$0xff]
  %v65 = vld [vmem:[%s1 + $0x20] sm:$0xff]
  %v66 = vld [vmem:[%s1 + $0x28] sm:$0xff]
  %v67 = vld [vmem:[%s1 + $0x30] sm:$0xff]
  %v68 = vld [vmem:[%s1 + $0x38] sm:$0xff]
  %v69 = vld [vmem:[%s1 + $0x40] sm:$0xff]
  %v70 = vld [vmem:[%s1 + $0x48] sm:$0xff]
  %v71 = vld [vmem:[%s1 + $0x50] sm:$0xff]
  %v72 = vld [vmem:[%s1 + $0x58] sm:$0xff]
  %v73 = vld [vmem:[%s1 + $0x60] sm:$0xff]
  %v74 = vld [vmem:[%s1 + $0x68] sm:$0xff]
  %v75 = vld [vmem:[%s1 + $0x70] sm:$0xff]
  %v76 = vld [vmem:[%s1 + $0x78] sm:$0xff]
  %v77 = vld [vmem:[%s1 + $0x80] sm:$0xff]
  %v78 = vld [vmem:[%s1 + $0x88] sm:$0xff]
  %v79 = vld [vmem:[%s1 + $0x90] sm:$0xff]
  %v80 = vld [vmem:[%s1 + $0x98] sm:$0xff]
  %v81 = vld [vmem:[%s1 + $0xa0] sm:$0xff]
  %v82 = vld [vmem:[%s1 + $0xa8] sm:$0xff]
  %v83 = vld [vmem:[%s1 + $0xb0] sm:$0xff]
  %v84 = vld [vmem:[%s1 + $0xb8] sm:$0xff]
  %v85 = vld [vmem:[%s1 + $0xc0] sm:$0xff]
  %v86 = vld [vmem:[%s1 + $0xc8] sm:$0xff]
  %v87 = vld [vmem:[%s1 + $0xd0] sm:$0xff]
  %v88 = vld [vmem:[%s1 + $0xd8] sm:$0xff]
  %v89 = vld [vmem:[%s1 + $0xe0] sm:$0xff]
  %v90 = vld [vmem:[%s1 + $0xe8] sm:$0xff]
  %v91 = vld [vmem:[%s1 + $0xf0] sm:$0xff]
  %v92 = vld [vmem:[%s1 + $0xf8] sm:$0xff]
  %v93 = vld [vmem:[%s1 + $0x100] sm:$0xff]
  %v94 = vld [vmem:[%s1 + $0x108] sm:$0xff]
  %v95 = vld [vmem:[%s1 + $0x110] sm:$0xff]
  %v96 = vld [vmem:[%s1 + $0x118] sm:$0xff]
  %v97 = vld [vmem:[%s1 + $0x120] sm:$0xff]
  %v98 = vld [vmem:[%s1 + $0x128] sm:$0xff]
  %v99 = vld [vmem:[%s1 + $0x130] sm:$0xff]
  %v100 = vld [vmem:[%s1 + $0x138] sm:$0xff]
  %v101 = vld [vmem:[%s1 + $0x140] sm:$0xff]
  %v102 = vld [vmem:[%s1 + $0x148] sm:$0xff]
  %v103 = vld [vmem:[%s1 + $0x150] sm:$0xff]
  %v104 = vld [vmem:[%s1 + $0x158] sm:$0xff]
  %v105 = vld [vmem:[%s1 + $0x160] sm:$0xff]
  %v106 = vld [vmem:[%s1 + $0x168] sm:$0xff]
  %v107 = vld [vmem:[%s1 + $0x170] sm:$0xff]
  %v108 = vld [vmem:[%s1 + $0x178] sm:$0xff]
  %v109 = vld [vmem:[%s1 + $0x180] sm:$0xff]
  %v110 = vld [vmem:[%s1 + $0x188] sm:$0xff]
  %v111 = vld [vmem:[%s1 + $0x190] sm:$0xff]
  %v112 = vld [vmem:[%s1 + $0x198] sm:$0xff]
  %v113 = vld [vmem:[%s1 + $0x1a0] sm:$0xff]
  %v114 = vld [vmem:[%s1 + $0x1a8] sm:$0xff]
  %v115 = vld [vmem:[%s1 + $0x1b0] sm:$0xff]
  %v116 = vld [vmem:[%s1 + $0x1b8] sm:$0xff]
  %v117 = vld [vmem:[%s1 + $0x1c0] sm:$0xff]
  %v118 = vld [vmem:[%s1 + $0x1c8] sm:$0xff]
  %v119 = vld [vmem:[%s1 + $0x1d0] sm:$0xff]
  %v120 = vld [vmem:[%s1 + $0x1d8] sm:$0xff]
  %v121 = vld [vmem:[%s1 + $0x1e0] sm:$0xff]
  %v122 = vld [vmem:[%s1 + $0x1e8] sm:$0xff]
  %v123 = vld [vmem:[%s1 + $0x1f0] sm:$0xff]
  %v124 = vld [vmem:[%s1 + $0x1f8] sm:$0xff]
  %v125 = vld [vmem:[%s2] sm:$0x3]
  %v127 = vlaneseq
  %v128 = vshrl.u32 %v127, 7
  %v129 = vsub.s32 0, %v128
  %v130 = vrot.slane %v125, %v129
  %v131 = vlaneseq
  %v132 = vshrl.u32 %v131, 7
  %v133 = vsub.s32 1, %v132
  %v134 = vrot.slane %v125, %v133
  %v153 = vunpack.c.l.b16 %v45
  %v154 = vunpack.c.h.b16 %v45
  %v155 = vunpack.c.l.b16 %v46
  %v156 = vunpack.c.h.b16 %v46
  %v157 = vunpack.c.l.b16 %v47
  %v158 = vunpack.c.h.b16 %v47
  %v159 = vunpack.c.l.b16 %v48
  %v160 = vunpack.c.h.b16 %v48
  %v161 = vunpack.c.l.b16 %v49
  %v162 = vunpack.c.h.b16 %v49
  %v163 = vunpack.c.l.b16 %v50
  %v164 = vunpack.c.h.b16 %v50
  %v165 = vunpack.c.l.b16 %v51
  %v166 = vunpack.c.h.b16 %v51
  %v167 = vunpack.c.l.b16 %v52
  %v168 = vunpack.c.h.b16 %v52
  %v169 = vunpack.c.l.b16 %v53
  %v170 = vunpack.c.h.b16 %v53
  %v171 = vunpack.c.l.b16 %v54
  %v172 = vunpack.c.h.b16 %v54
  %v173 = vunpack.c.l.b16 %v55
  %v174 = vunpack.c.h.b16 %v55
  %v175 = vunpack.c.l.b16 %v56
  %v176 = vunpack.c.h.b16 %v56
  %v177 = vunpack.c.l.b16 %v57
  %v178 = vunpack.c.h.b16 %v57
  %v179 = vunpack.c.l.b16 %v58
  %v180 = vunpack.c.h.b16 %v58
  %v181 = vunpack.c.l.b16 %v59
  %v182 = vunpack.c.h.b16 %v59
  %v183 = vunpack.c.l.b16 %v60
  %v184 = vunpack.c.h.b16 %v60
  %v185 = vpack.c.b16 %v157, %v153
  %v186 = vpack.c.b16 %v158, %v154
  %v187 = vpack.c.b16 %v159, %v155
  %v188 = vpack.c.b16 %v160, %v156
  %v189 = vpack.c.b16 %v165, %v161
  %v190 = vpack.c.b16 %v166, %v162
  %v191 = vpack.c.b16 %v167, %v163
  %v192 = vpack.c.b16 %v168, %v164
  %v193 = vpack.c.b16 %v173, %v169
  %v194 = vpack.c.b16 %v174, %v170
  %v195 = vpack.c.b16 %v175, %v171
  %v196 = vpack.c.b16 %v176, %v172
  %v197 = vpack.c.b16 %v181, %v177
  %v198 = vpack.c.b16 %v182, %v178
  %v199 = vpack.c.b16 %v183, %v179
  %v200 = vpack.c.b16 %v184, %v180
  %v281 = vunpack.c.l.b16 %v61
  %v282 = vunpack.c.h.b16 %v61
  %v283 = vunpack.c.l.b16 %v62
  %v284 = vunpack.c.h.b16 %v62
  %v285 = vunpack.c.l.b16 %v63
  %v286 = vunpack.c.h.b16 %v63
  %v287 = vunpack.c.l.b16 %v64
  %v288 = vunpack.c.h.b16 %v64
  %v289 = vunpack.c.l.b16 %v65
  %v290 = vunpack.c.h.b16 %v65
  %v291 = vunpack.c.l.b16 %v66
  %v292 = vunpack.c.h.b16 %v66
  %v293 = vunpack.c.l.b16 %v67
  %v294 = vunpack.c.h.b16 %v67
  %v295 = vunpack.c.l.b16 %v68
  %v296 = vunpack.c.h.b16 %v68
  %v297 = vunpack.c.l.b16 %v69
  %v298 = vunpack.c.h.b16 %v69
  %v299 = vunpack.c.l.b16 %v70
  %v300 = vunpack.c.h.b16 %v70
  %v301 = vunpack.c.l.b16 %v71
  %v302 = vunpack.c.h.b16 %v71
  %v303 = vunpack.c.l.b16 %v72
  %v304 = vunpack.c.h.b16 %v72
  %v305 = vunpack.c.l.b16 %v73
  %v306 = vunpack.c.h.b16 %v73
  %v307 = vunpack.c.l.b16 %v74
  %v308 = vunpack.c.h.b16 %v74
  %v309 = vunpack.c.l.b16 %v75
  %v310 = vunpack.c.h.b16 %v75
  %v311 = vunpack.c.l.b16 %v76
  %v312 = vunpack.c.h.b16 %v76
  %v313 = vunpack.c.l.b16 %v77
  %v314 = vunpack.c.h.b16 %v77
  %v315 = vunpack.c.l.b16 %v78
  %v316 = vunpack.c.h.b16 %v78
  %v317 = vunpack.c.l.b16 %v79
  %v318 = vunpack.c.h.b16 %v79
  %v319 = vunpack.c.l.b16 %v80
  %v320 = vunpack.c.h.b16 %v80
  %v321 = vunpack.c.l.b16 %v81
  %v322 = vunpack.c.h.b16 %v81
  %v323 = vunpack.c.l.b16 %v82
  %v324 = vunpack.c.h.b16 %v82
  %v325 = vunpack.c.l.b16 %v83
  %v326 = vunpack.c.h.b16 %v83
  %v327 = vunpack.c.l.b16 %v84
  %v328 = vunpack.c.h.b16 %v84
  %v329 = vunpack.c.l.b16 %v85
  %v330 = vunpack.c.h.b16 %v85
  %v331 = vunpack.c.l.b16 %v86
  %v332 = vunpack.c.h.b16 %v86
  %v333 = vunpack.c.l.b16 %v87
  %v334 = vunpack.c.h.b16 %v87
  %v335 = vunpack.c.l.b16 %v88
  %v336 = vunpack.c.h.b16 %v88
  %v337 = vunpack.c.l.b16 %v89
  %v338 = vunpack.c.h.b16 %v89
  %v339 = vunpack.c.l.b16 %v90
  %v340 = vunpack.c.h.b16 %v90
  %v341 = vunpack.c.l.b16 %v91
  %v342 = vunpack.c.h.b16 %v91
  %v343 = vunpack.c.l.b16 %v92
  %v344 = vunpack.c.h.b16 %v92
  %v345 = vunpack.c.l.b16 %v93
  %v346 = vunpack.c.h.b16 %v93
  %v347 = vunpack.c.l.b16 %v94
  %v348 = vunpack.c.h.b16 %v94
  %v349 = vunpack.c.l.b16 %v95
  %v350 = vunpack.c.h.b16 %v95
  %v351 = vunpack.c.l.b16 %v96
  %v352 = vunpack.c.h.b16 %v96
  %v353 = vunpack.c.l.b16 %v97
  %v354 = vunpack.c.h.b16 %v97
  %v355 = vunpack.c.l.b16 %v98
  %v356 = vunpack.c.h.b16 %v98
  %v357 = vunpack.c.l.b16 %v99
  %v358 = vunpack.c.h.b16 %v99
  %v359 = vunpack.c.l.b16 %v100
  %v360 = vunpack.c.h.b16 %v100
  %v361 = vunpack.c.l.b16 %v101
  %v362 = vunpack.c.h.b16 %v101
  %v363 = vunpack.c.l.b16 %v102
  %v364 = vunpack.c.h.b16 %v102
  %v365 = vunpack.c.l.b16 %v103
  %v366 = vunpack.c.h.b16 %v103
  %v367 = vunpack.c.l.b16 %v104
  %v368 = vunpack.c.h.b16 %v104
  %v369 = vunpack.c.l.b16 %v105
  %v370 = vunpack.c.h.b16 %v105
  %v371 = vunpack.c.l.b16 %v106
  %v372 = vunpack.c.h.b16 %v106
  %v373 = vunpack.c.l.b16 %v107
  %v374 = vunpack.c.h.b16 %v107
  %v375 = vunpack.c.l.b16 %v108
  %v376 = vunpack.c.h.b16 %v108
  %v377 = vunpack.c.l.b16 %v109
  %v378 = vunpack.c.h.b16 %v109
  %v379 = vunpack.c.l.b16 %v110
  %v380 = vunpack.c.h.b16 %v110
  %v381 = vunpack.c.l.b16 %v111
  %v382 = vunpack.c.h.b16 %v111
  %v383 = vunpack.c.l.b16 %v112
  %v384 = vunpack.c.h.b16 %v112
  %v385 = vunpack.c.l.b16 %v113
  %v386 = vunpack.c.h.b16 %v113
  %v387 = vunpack.c.l.b16 %v114
  %v388 = vunpack.c.h.b16 %v114
  %v389 = vunpack.c.l.b16 %v115
  %v390 = vunpack.c.h.b16 %v115
  %v391 = vunpack.c.l.b16 %v116
  %v392 = vunpack.c.h.b16 %v116
  %v393 = vunpack.c.l.b16 %v117
  %v394 = vunpack.c.h.b16 %v117
  %v395 = vunpack.c.l.b16 %v118
  %v396 = vunpack.c.h.b16 %v118
  %v397 = vunpack.c.l.b16 %v119
  %v398 = vunpack.c.h.b16 %v119
  %v399 = vunpack.c.l.b16 %v120
  %v400 = vunpack.c.h.b16 %v120
  %v401 = vunpack.c.l.b16 %v121
  %v402 = vunpack.c.h.b16 %v121
  %v403 = vunpack.c.l.b16 %v122
  %v404 = vunpack.c.h.b16 %v122
  %v405 = vunpack.c.l.b16 %v123
  %v406 = vunpack.c.h.b16 %v123
  %v407 = vunpack.c.l.b16 %v124
  %v408 = vunpack.c.h.b16 %v124
  %v409 = vpack.c.b16 %v283, %v281
  %v410 = vpack.c.b16 %v284, %v282
  %v411 = vpack.c.b16 %v287, %v285
  %v412 = vpack.c.b16 %v288, %v286
  %v413 = vpack.c.b16 %v291, %v289
  %v414 = vpack.c.b16 %v292, %v290
  %v415 = vpack.c.b16 %v295, %v293
  %v416 = vpack.c.b16 %v296, %v294
  %v417 = vpack.c.b16 %v299, %v297
  %v418 = vpack.c.b16 %v300, %v298
  %v419 = vpack.c.b16 %v303, %v301
  %v420 = vpack.c.b16 %v304, %v302
  %v421 = vpack.c.b16 %v307, %v305
  %v422 = vpack.c.b16 %v308, %v306
  %v423 = vpack.c.b16 %v311, %v309
  %v424 = vpack.c.b16 %v312, %v310
  %v425 = vpack.c.b16 %v315, %v313
  %v426 = vpack.c.b16 %v316, %v314
  %v427 = vpack.c.b16 %v319, %v317
  %v428 = vpack.c.b16 %v320, %v318
  %v429 = vpack.c.b16 %v323, %v321
  %v430 = vpack.c.b16 %v324, %v322
  %v431 = vpack.c.b16 %v327, %v325
  %v432 = vpack.c.b16 %v328, %v326
  %v433 = vpack.c.b16 %v331, %v329
  %v434 = vpack.c.b16 %v332, %v330
  %v435 = vpack.c.b16 %v335, %v333
  %v436 = vpack.c.b16 %v336, %v334
  %v437 = vpack.c.b16 %v339, %v337
  %v438 = vpack.c.b16 %v340, %v338
  %v439 = vpack.c.b16 %v343, %v341
  %v440 = vpack.c.b16 %v344, %v342
  %v441 = vpack.c.b16 %v347, %v345
  %v442 = vpack.c.b16 %v348, %v346
  %v443 = vpack.c.b16 %v351, %v349
  %v444 = vpack.c.b16 %v352, %v350
  %v445 = vpack.c.b16 %v355, %v353
  %v446 = vpack.c.b16 %v356, %v354
  %v447 = vpack.c.b16 %v359, %v357
  %v448 = vpack.c.b16 %v360, %v358
  %v449 = vpack.c.b16 %v363, %v361
  %v450 = vpack.c.b16 %v364, %v362
  %v451 = vpack.c.b16 %v367, %v365
  %v452 = vpack.c.b16 %v368, %v366
  %v453 = vpack.c.b16 %v371, %v369
  %v454 = vpack.c.b16 %v372, %v370
  %v455 = vpack.c.b16 %v375, %v373
  %v456 = vpack.c.b16 %v376, %v374
  %v457 = vpack.c.b16 %v379, %v377
  %v458 = vpack.c.b16 %v380, %v378
  %v459 = vpack.c.b16 %v383, %v381
  %v460 = vpack.c.b16 %v384, %v382
  %v461 = vpack.c.b16 %v387, %v385
  %v462 = vpack.c.b16 %v388, %v386
  %v463 = vpack.c.b16 %v391, %v389
  %v464 = vpack.c.b16 %v392, %v390
  %v465 = vpack.c.b16 %v395, %v393
  %v466 = vpack.c.b16 %v396, %v394
  %v467 = vpack.c.b16 %v399, %v397
  %v468 = vpack.c.b16 %v400, %v398
  %v469 = vpack.c.b16 %v403, %v401
  %v470 = vpack.c.b16 %v404, %v402
  %v471 = vpack.c.b16 %v407, %v405
  %v472 = vpack.c.b16 %v408, %v406
  %537 = vmatprep.subr.bf16.mxu0 %v410
  %538 = vmatpush1.bf16.msra.mxu0 %v409
  %539 = vmatprep.subr.bf16.mxu0 %v412
  %540 = vmatpush1.bf16.msra.mxu0 %v411
  %541 = vmatprep.subr.bf16.mxu0 %v414
  %542 = vmatpush1.bf16.msra.mxu0 %v413
  %543 = vmatprep.subr.bf16.mxu0 %v416
  %544 = vmatpush1.bf16.msra.mxu0 %v415
  %545 = vmatprep.subr.bf16.mxu0 %v418
  %546 = vmatpush1.bf16.msra.mxu0 %v417
  %547 = vmatprep.subr.bf16.mxu0 %v420
  %548 = vmatpush1.bf16.msra.mxu0 %v419
  %549 = vmatprep.subr.bf16.mxu0 %v422
  %550 = vmatpush1.bf16.msra.mxu0 %v421
  %551 = vmatprep.subr.bf16.mxu0 %v424
  %552 = vmatpush1.bf16.msra.mxu0 %v423
  %553 = vmatprep.subr.bf16.mxu0 %v426
  %554 = vmatpush1.bf16.msra.mxu0 %v425
  %555 = vmatprep.subr.bf16.mxu0 %v428
  %556 = vmatpush1.bf16.msra.mxu0 %v427
  %557 = vmatprep.subr.bf16.mxu0 %v430
  %558 = vmatpush1.bf16.msra.mxu0 %v429
  %559 = vmatprep.subr.bf16.mxu0 %v432
  %560 = vmatpush1.bf16.msra.mxu0 %v431
  %561 = vmatprep.subr.bf16.mxu0 %v434
  %562 = vmatpush1.bf16.msra.mxu0 %v433
  %563 = vmatprep.subr.bf16.mxu0 %v436
  %564 = vmatpush1.bf16.msra.mxu0 %v435
  %565 = vmatprep.subr.bf16.mxu0 %v438
  %566 = vmatpush1.bf16.msra.mxu0 %v437
  %567 = vmatprep.subr.bf16.mxu0 %v440
  %568 = vmatpush1.bf16.msra.mxu0 %v439
  %569 = vmatprep.mubr.bf16.mxu0 %v186
  %570 = vmatmul.mubr.bf16.gmra.mrb[0].mxu0 %v185
  %v571 = vpop.f32.mrb[0].mxu0
  %v572 = vadd.f32 %v130, %v571
  %v573 = vpop.f32.mrb[0].mxu0
  %v574 = vadd.f32 %v134, %v573
  %v575 = vpop.f32.mrb[0].mxu0
  %v576 = vadd.f32 %v130, %v575
  %v577 = vpop.f32.mrb[0].mxu0
  %v578 = vadd.f32 %v134, %v577
  %579 = vmatprep.mubr.bf16.mxu0 %v190
  %580 = vmatmul.mubr.bf16.gmra.mrb[0].mxu0 %v189
  %v581 = vpop.f32.mrb[0].mxu0
  %v582 = vadd.f32 %v130, %v581
  %v583 = vpop.f32.mrb[0].mxu0
  %v584 = vadd.f32 %v134, %v583
  %v585 = vpop.f32.mrb[0].mxu0
  %v586 = vadd.f32 %v130, %v585
  %v587 = vpop.f32.mrb[0].mxu0
  %v588 = vadd.f32 %v134, %v587
  %589 = vmatprep.mubr.bf16.mxu0 %v194
  %590 = vmatmul.mubr.bf16.gmra.mrb[0].mxu0 %v193
  %v591 = vpop.f32.mrb[0].mxu0
  %v592 = vadd.f32 %v130, %v591
  %v593 = vpop.f32.mrb[0].mxu0
  %v594 = vadd.f32 %v134, %v593
  %v595 = vpop.f32.mrb[0].mxu0
  %v596 = vadd.f32 %v130, %v595
  %v597 = vpop.f32.mrb[0].mxu0
  %v598 = vadd.f32 %v134, %v597
  %599 = vmatprep.mubr.bf16.mxu0 %v198
  %600 = vmatmul.mubr.bf16.gmra.mrb[0].mxu0 %v197
  %v601 = vpop.f32.mrb[0].mxu0
  %v602 = vadd.f32 %v130, %v601
  %v603 = vpop.f32.mrb[0].mxu0
  %v604 = vadd.f32 %v134, %v603
  %v605 = vpop.f32.mrb[0].mxu0
  %v606 = vadd.f32 %v130, %v605
  %v607 = vpop.f32.mrb[0].mxu0
  %v608 = vadd.f32 %v134, %v607
  %609 = vdwg.mxu0
  %610 = vmatprep.subr.bf16.mxu0 %v442
  %611 = vmatpush1.bf16.msra.mxu0 %v441
  %612 = vmatprep.subr.bf16.mxu0 %v444
  %613 = vmatpush1.bf16.msra.mxu0 %v443
  %614 = vmatprep.subr.bf16.mxu0 %v446
  %615 = vmatpush1.bf16.msra.mxu0 %v445
  %616 = vmatprep.subr.bf16.mxu0 %v448
  %617 = vmatpush1.bf16.msra.mxu0 %v447
  %618 = vmatprep.subr.bf16.mxu0 %v450
  %619 = vmatpush1.bf16.msra.mxu0 %v449
  %620 = vmatprep.subr.bf16.mxu0 %v452
  %621 = vmatpush1.bf16.msra.mxu0 %v451
  %622 = vmatprep.subr.bf16.mxu0 %v454
  %623 = vmatpush1.bf16.msra.mxu0 %v453
  %624 = vmatprep.subr.bf16.mxu0 %v456
  %625 = vmatpush1.bf16.msra.mxu0 %v455
  %626 = vmatprep.subr.bf16.mxu0 %v458
  %627 = vmatpush1.bf16.msra.mxu0 %v457
  %628 = vmatprep.subr.bf16.mxu0 %v460
  %629 = vmatpush1.bf16.msra.mxu0 %v459
  %630 = vmatprep.subr.bf16.mxu0 %v462
  %631 = vmatpush1.bf16.msra.mxu0 %v461
  %632 = vmatprep.subr.bf16.mxu0 %v464
  %633 = vmatpush1.bf16.msra.mxu0 %v463
  %634 = vmatprep.subr.bf16.mxu0 %v466
  %635 = vmatpush1.bf16.msra.mxu0 %v465
  %636 = vmatprep.subr.bf16.mxu0 %v468
  %637 = vmatpush1.bf16.msra.mxu0 %v467
  %638 = vmatprep.subr.bf16.mxu0 %v470
  %639 = vmatpush1.bf16.msra.mxu0 %v469
  %640 = vmatprep.subr.bf16.mxu0 %v472
  %641 = vmatpush1.bf16.msra.mxu0 %v471
  %642 = vmatprep.mubr.bf16.mxu0 %v188
  %643 = vmatmul.mubr.bf16.gmra.mrb[0].mxu0 %v187
  %v644 = vpop.f32.mrb[0].mxu0
  %v645 = vadd.f32 %v572, %v644
  %v646 = vpop.f32.mrb[0].mxu0
  %v647 = vadd.f32 %v574, %v646
  %v648 = vpop.f32.mrb[0].mxu0
  %v649 = vadd.f32 %v576, %v648
  %v650 = vpop.f32.mrb[0].mxu0
  %v651 = vadd.f32 %v578, %v650
  %652 = vmatprep.mubr.bf16.mxu0 %v192
  %653 = vmatmul.mubr.bf16.gmra.mrb[0].mxu0 %v191
  %v654 = vpop.f32.mrb[0].mxu0
  %v655 = vadd.f32 %v582, %v654
  %v656 = vpop.f32.mrb[0].mxu0
  %v657 = vadd.f32 %v584, %v656
  %v658 = vpop.f32.mrb[0].mxu0
  %v659 = vadd.f32 %v586, %v658
  %v660 = vpop.f32.mrb[0].mxu0
  %v661 = vadd.f32 %v588, %v660
  %662 = vmatprep.mubr.bf16.mxu0 %v196
  %663 = vmatmul.mubr.bf16.gmra.mrb[0].mxu0 %v195
  %v664 = vpop.f32.mrb[0].mxu0
  %v665 = vadd.f32 %v592, %v664
  %v666 = vpop.f32.mrb[0].mxu0
  %v667 = vadd.f32 %v594, %v666
  %v668 = vpop.f32.mrb[0].mxu0
  %v669 = vadd.f32 %v596, %v668
  %v670 = vpop.f32.mrb[0].mxu0
  %v671 = vadd.f32 %v598, %v670
  %672 = vmatprep.mubr.bf16.mxu0 %v200
  %673 = vmatmul.mubr.bf16.gmra.mrb[0].mxu0 %v199
  %v674 = vpop.f32.mrb[0].mxu0
  %v675 = vadd.f32 %v602, %v674
  %v676 = vpop.f32.mrb[0].mxu0
  %v677 = vadd.f32 %v604, %v676
  %v678 = vpop.f32.mrb[0].mxu0
  %v679 = vadd.f32 %v606, %v678
  %v680 = vpop.f32.mrb[0].mxu0
  %v681 = vadd.f32 %v608, %v680
  %682 = vdwg.mxu0
  %v683 = vmax.f32 %v645, 0.0
  %v684 = vmax.f32 %v647, 0.0
  %v685 = vmax.f32 %v649, 0.0
  %v686 = vmax.f32 %v651, 0.0
  %v687 = vmax.f32 %v655, 0.0
  %v688 = vmax.f32 %v657, 0.0
  %v689 = vmax.f32 %v659, 0.0
  %v690 = vmax.f32 %v661, 0.0
  %v691 = vmax.f32 %v665, 0.0
  %v692 = vmax.f32 %v667, 0.0
  %v693 = vmax.f32 %v669, 0.0
  %v694 = vmax.f32 %v671, 0.0
  %v695 = vmax.f32 %v675, 0.0
  %v696 = vmax.f32 %v677, 0.0
  %v697 = vmax.f32 %v679, 0.0
  %v698 = vmax.f32 %v681, 0.0
  %v699 = vpack.c.bf16 %v685, %v683
  %v700 = vpack.c.bf16 %v686, %v684
  %v701 = vpack.c.bf16 %v689, %v687
  %v702 = vpack.c.bf16 %v690, %v688
  %v703 = vpack.c.bf16 %v693, %v691
  %v704 = vpack.c.bf16 %v694, %v692
  %v705 = vpack.c.bf16 %v697, %v695
  %v706 = vpack.c.bf16 %v698, %v696
  %v707 = vld [vmem:[%s3] sm:$0xf]
  %v708 = vld [vmem:[%s3 + $0x4] sm:$0xf]
  %v709 = vld [vmem:[%s3 + $0x8] sm:$0xf]
  %v710 = vld [vmem:[%s3 + $0xc] sm:$0xf]
  %v711 = vld [vmem:[%s3 + $0x10] sm:$0xf]
  %v712 = vld [vmem:[%s3 + $0x14] sm:$0xf]
  %v713 = vld [vmem:[%s3 + $0x18] sm:$0xf]
  %v714 = vld [vmem:[%s3 + $0x1c] sm:$0xf]
  %v715 = vld [vmem:[%s3 + $0x20] sm:$0xf]
  %v716 = vld [vmem:[%s3 + $0x24] sm:$0xf]
  %v717 = vld [vmem:[%s3 + $0x28] sm:$0xf]
  %v718 = vld [vmem:[%s3 + $0x2c] sm:$0xf]
  %v719 = vld [vmem:[%s3 + $0x30] sm:$0xf]
  %v720 = vld [vmem:[%s3 + $0x34] sm:$0xf]
  %v721 = vld [vmem:[%s3 + $0x38] sm:$0xf]
  %v722 = vld [vmem:[%s3 + $0x3c] sm:$0xf]
  %v723 = vld [vmem:[%s3 + $0x40] sm:$0xf]
  %v724 = vld [vmem:[%s3 + $0x44] sm:$0xf]
  %v725 = vld [vmem:[%s3 + $0x48] sm:$0xf]
  %v726 = vld [vmem:[%s3 + $0x4c] sm:$0xf]
  %v727 = vld [vmem:[%s3 + $0x50] sm:$0xf]
  %v728 = vld [vmem:[%s3 + $0x54] sm:$0xf]
  %v729 = vld [vmem:[%s3 + $0x58] sm:$0xf]
  %v730 = vld [vmem:[%s3 + $0x5c] sm:$0xf]
  %v731 = vld [vmem:[%s3 + $0x60] sm:$0xf]
  %v732 = vld [vmem:[%s3 + $0x64] sm:$0xf]
  %v733 = vld [vmem:[%s3 + $0x68] sm:$0xf]
  %v734 = vld [vmem:[%s3 + $0x6c] sm:$0xf]
  %v735 = vld [vmem:[%s3 + $0x70] sm:$0xf]
  %v736 = vld [vmem:[%s3 + $0x74] sm:$0xf]
  %v737 = vld [vmem:[%s3 + $0x78] sm:$0xf]
  %v738 = vld [vmem:[%s3 + $0x7c] sm:$0xf]
  %v739 = vld [vmem:[%s4] sm:$0x1]
  %v741 = vlaneseq
  %v742 = vshrl.u32 %v741, 7
  %v743 = vsub.s32 0, %v742
  %v744 = vrot.slane %v739, %v743
  %v778 = vunpack.c.l.b16 %v707
  %v779 = vunpack.c.l.b16 %v708
  %v780 = vunpack.c.l.b16 %v709
  %v781 = vunpack.c.l.b16 %v710
  %v782 = vunpack.c.l.b16 %v711
  %v783 = vunpack.c.l.b16 %v712
  %v784 = vunpack.c.l.b16 %v713
  %v785 = vunpack.c.l.b16 %v714
  %v786 = vunpack.c.l.b16 %v715
  %v787 = vunpack.c.l.b16 %v716
  %v788 = vunpack.c.l.b16 %v717
  %v789 = vunpack.c.l.b16 %v718
  %v790 = vunpack.c.l.b16 %v719
  %v791 = vunpack.c.l.b16 %v720
  %v792 = vunpack.c.l.b16 %v721
  %v793 = vunpack.c.l.b16 %v722
  %v794 = vunpack.c.l.b16 %v723
  %v795 = vunpack.c.l.b16 %v724
  %v796 = vunpack.c.l.b16 %v725
  %v797 = vunpack.c.l.b16 %v726
  %v798 = vunpack.c.l.b16 %v727
  %v799 = vunpack.c.l.b16 %v728
  %v800 = vunpack.c.l.b16 %v729
  %v801 = vunpack.c.l.b16 %v730
  %v802 = vunpack.c.l.b16 %v731
  %v803 = vunpack.c.l.b16 %v732
  %v804 = vunpack.c.l.b16 %v733
  %v805 = vunpack.c.l.b16 %v734
  %v806 = vunpack.c.l.b16 %v735
  %v807 = vunpack.c.l.b16 %v736
  %v808 = vunpack.c.l.b16 %v737
  %v809 = vunpack.c.l.b16 %v738
  %v810 = vpack.c.b16 %v779, %v778
  %v811 = vpack.c.b16 %v781, %v780
  %v812 = vpack.c.b16 %v783, %v782
  %v813 = vpack.c.b16 %v785, %v784
  %v814 = vpack.c.b16 %v787, %v786
  %v815 = vpack.c.b16 %v789, %v788
  %v816 = vpack.c.b16 %v791, %v790
  %v817 = vpack.c.b16 %v793, %v792
  %v818 = vpack.c.b16 %v795, %v794
  %v819 = vpack.c.b16 %v797, %v796
  %v820 = vpack.c.b16 %v799, %v798
  %v821 = vpack.c.b16 %v801, %v800
  %v822 = vpack.c.b16 %v803, %v802
  %v823 = vpack.c.b16 %v805, %v804
  %v824 = vpack.c.b16 %v807, %v806
  %v825 = vpack.c.b16 %v809, %v808
  %842 = vmatprep.subr.bf16.mxu0 0
  %843 = vmatpush1.bf16.msra.mxu0 %v810
  %844 = vmatprep.subr.bf16.mxu0 0
  %845 = vmatpush1.bf16.msra.mxu0 %v811
  %846 = vmatprep.subr.bf16.mxu0 0
  %847 = vmatpush1.bf16.msra.mxu0 %v812
  %848 = vmatprep.subr.bf16.mxu0 0
  %849 = vmatpush1.bf16.msra.mxu0 %v813
  %850 = vmatprep.subr.bf16.mxu0 0
  %851 = vmatpush1.bf16.msra.mxu0 %v814
  %852 = vmatprep.subr.bf16.mxu0 0
  %853 = vmatpush1.bf16.msra.mxu0 %v815
  %854 = vmatprep.subr.bf16.mxu0 0
  %855 = vmatpush1.bf16.msra.mxu0 %v816
  %856 = vmatprep.subr.bf16.mxu0 0
  %857 = vmatpush1.bf16.msra.mxu0 %v817
  %858 = vmatprep.subr.bf16.mxu0 0
  %859 = vmatpush1.bf16.msra.mxu0 %v818
  %860 = vmatprep.subr.bf16.mxu0 0
  %861 = vmatpush1.bf16.msra.mxu0 %v819
  %862 = vmatprep.subr.bf16.mxu0 0
  %863 = vmatpush1.bf16.msra.mxu0 %v820
  %864 = vmatprep.subr.bf16.mxu0 0
  %865 = vmatpush1.bf16.msra.mxu0 %v821
  %866 = vmatprep.subr.bf16.mxu0 0
  %867 = vmatpush1.bf16.msra.mxu0 %v822
  %868 = vmatprep.subr.bf16.mxu0 0
  %869 = vmatpush1.bf16.msra.mxu0 %v823
  %870 = vmatprep.subr.bf16.mxu0 0
  %871 = vmatpush1.bf16.msra.mxu0 %v824
  %872 = vmatprep.subr.bf16.mxu0 0
  %873 = vmatpush1.bf16.msra.mxu0 %v825
  %874 = vmatprep.mubr.bf16.mxu0 %v700
  %875 = vmatmul.mubr.bf16.gmra.mrb[0].mxu0 %v699
  %v876 = vpop.f32.mrb[0].mxu0
  %v877 = vadd.f32 %v744, %v876
  %v878 = vpop.f32.mrb[0].mxu0
  %v879 = vpop.f32.mrb[0].mxu0
  %v880 = vadd.f32 %v744, %v879
  %v881 = vpop.f32.mrb[0].mxu0
  %882 = vmatprep.mubr.bf16.mxu0 %v702
  %883 = vmatmul.mubr.bf16.gmra.mrb[0].mxu0 %v701
  %v884 = vpop.f32.mrb[0].mxu0
  %v885 = vadd.f32 %v744, %v884
  %v886 = vpop.f32.mrb[0].mxu0
  %v887 = vpop.f32.mrb[0].mxu0
  %v888 = vadd.f32 %v744, %v887
  %v889 = vpop.f32.mrb[0].mxu0
  %890 = vmatprep.mubr.bf16.mxu0 %v704
  %891 = vmatmul.mubr.bf16.gmra.mrb[0].mxu0 %v703
  %v892 = vpop.f32.mrb[0].mxu0
  %v893 = vadd.f32 %v744, %v892
  %v894 = vpop.f32.mrb[0].mxu0
  %v895 = vpop.f32.mrb[0].mxu0
  %v896 = vadd.f32 %v744, %v895
  %v897 = vpop.f32.mrb[0].mxu0
  %898 = vmatprep.mubr.bf16.mxu0 %v706
  %899 = vmatmul.mubr.bf16.gmra.mrb[0].mxu0 %v705
  %v900 = vpop.f32.mrb[0].mxu0
  %v901 = vadd.f32 %v744, %v900
  %v902 = vpop.f32.mrb[0].mxu0
  %v903 = vpop.f32.mrb[0].mxu0
  %v904 = vadd.f32 %v744, %v903
  %v905 = vpop.f32.mrb[0].mxu0
  %906 = vdwg.mxu0
  %v907 = vxor.u32 %v877, 2147483648
  %v908 = vxor.u32 %v880, 2147483648
  %v909 = vxor.u32 %v885, 2147483648
  %v910 = vxor.u32 %v888, 2147483648
  %v911 = vxor.u32 %v893, 2147483648
  %v912 = vxor.u32 %v896, 2147483648
  %v913 = vxor.u32 %v901, 2147483648
  %v914 = vxor.u32 %v904, 2147483648
  %v915 = vmul.f32 %v907, 1.442695
  %v916 = vpow.pop %v915
  %v917 = vmul.f32 %v908, 1.442695
  %v918 = vpow.pop %v917
  %v919 = vmul.f32 %v909, 1.442695
  %v920 = vpow.pop %v919
  %v921 = vmul.f32 %v910, 1.442695
  %v922 = vpow.pop %v921
  %v923 = vmul.f32 %v911, 1.442695
  %v924 = vpow.pop %v923
  %v925 = vmul.f32 %v912, 1.442695
  %v926 = vpow.pop %v925
  %v927 = vmul.f32 %v913, 1.442695
  %v928 = vpow.pop %v927
  %v929 = vmul.f32 %v914, 1.442695
  %v930 = vpow.pop %v929
  %v931 = vadd.f32 %v916, 1.0
  %v932 = vadd.f32 %v918, 1.0
  %v933 = vadd.f32 %v920, 1.0
  %v934 = vadd.f32 %v922, 1.0
  %v935 = vadd.f32 %v924, 1.0
  %v936 = vadd.f32 %v926, 1.0
  %v937 = vadd.f32 %v928, 1.0
  %v938 = vadd.f32 %v930, 1.0
  %v939 = vrcp.pop %v931
  %v940 = vmul.f32 1.0, %v939
  %v941 = vrcp.pop %v932
  %v942 = vmul.f32 1.0, %v941
  %v943 = vrcp.pop %v933
  %v944 = vmul.f32 1.0, %v943
  %v945 = vrcp.pop %v934
  %v946 = vmul.f32 1.0, %v945
  %v947 = vrcp.pop %v935
  %v948 = vmul.f32 1.0, %v947
  %v949 = vrcp.pop %v936
  %v950 = vmul.f32 1.0, %v949
  %v951 = vrcp.pop %v937
  %v952 = vmul.f32 1.0, %v951
  %v953 = vrcp.pop %v938
  %v954 = vmul.f32 1.0, %v953
  %v955 = vpack.c.bf16 %v942, %v940
  %v956 = vpack.c.bf16 %v946, %v944
  %v957 = vpack.c.bf16 %v950, %v948
  %v958 = vpack.c.bf16 %v954, %v952
  %v959 = vld [vmem:[%s5] sm:$0xf]
  %v960 = vld [vmem:[%s5 + $0x4] sm:$0xf]
  %v961 = vld [vmem:[%s5 + $0x8] sm:$0xf]
  %v962 = vld [vmem:[%s5 + $0xc] sm:$0xf]
  %v963 = vld [vmem:[%s5 + $0x10] sm:$0xf]
  %v964 = vld [vmem:[%s5 + $0x14] sm:$0xf]
  %v965 = vld [vmem:[%s5 + $0x18] sm:$0xf]
  %v966 = vld [vmem:[%s5 + $0x1c] sm:$0xf]
  %v967 = vld [vmem:[%s5 + $0x20] sm:$0xf]
  %v968 = vld [vmem:[%s5 + $0x24] sm:$0xf]
  %v969 = vld [vmem:[%s5 + $0x28] sm:$0xf]
  %v970 = vld [vmem:[%s5 + $0x2c] sm:$0xf]
  %v971 = vld [vmem:[%s5 + $0x30] sm:$0xf]
  %v972 = vld [vmem:[%s5 + $0x34] sm:$0xf]
  %v973 = vld [vmem:[%s5 + $0x38] sm:$0xf]
  %v974 = vld [vmem:[%s5 + $0x3c] sm:$0xf]
  %v975 = vld [vmem:[%s6] sm:$0x1]
  %v977 = vlaneseq
  %v978 = vshrl.u32 %v977, 7
  %v979 = vsub.s32 0, %v978
  %v980 = vrot.slane %v975, %v979
  %v998 = vunpack.c.l.b16 %v959
  %v999 = vunpack.c.l.b16 %v960
  %v1000 = vunpack.c.l.b16 %v961
  %v1001 = vunpack.c.l.b16 %v962
  %v1002 = vunpack.c.l.b16 %v963
  %v1003 = vunpack.c.l.b16 %v964
  %v1004 = vunpack.c.l.b16 %v965
  %v1005 = vunpack.c.l.b16 %v966
  %v1006 = vunpack.c.l.b16 %v967
  %v1007 = vunpack.c.l.b16 %v968
  %v1008 = vunpack.c.l.b16 %v969
  %v1009 = vunpack.c.l.b16 %v970
  %v1010 = vunpack.c.l.b16 %v971
  %v1011 = vunpack.c.l.b16 %v972
  %v1012 = vunpack.c.l.b16 %v973
  %v1013 = vunpack.c.l.b16 %v974
  %v1014 = vpack.c.b16 %v999, %v998
  %v1015 = vpack.c.b16 %v1001, %v1000
  %v1016 = vpack.c.b16 %v1003, %v1002
  %v1017 = vpack.c.b16 %v1005, %v1004
  %v1018 = vpack.c.b16 %v1007, %v1006
  %v1019 = vpack.c.b16 %v1009, %v1008
  %v1020 = vpack.c.b16 %v1011, %v1010
  %v1021 = vpack.c.b16 %v1013, %v1012
  %1030 = vmatprep.subr.bf16.mxu0 0
  %1031 = vmatpush1.bf16.msra.mxu0 %v1014
  %1032 = vmatprep.subr.bf16.mxu0 0
  %1033 = vmatpush1.bf16.msra.mxu0 %v1015
  %1034 = vmatprep.subr.bf16.mxu0 0
  %1035 = vmatpush1.bf16.msra.mxu0 %v1016
  %1036 = vmatprep.subr.bf16.mxu0 0
  %1037 = vmatpush1.bf16.msra.mxu0 %v1017
  %1038 = vmatprep.subr.bf16.mxu0 0
  %1039 = vmatpush1.bf16.msra.mxu0 %v1018
  %1040 = vmatprep.subr.bf16.mxu0 0
  %1041 = vmatpush1.bf16.msra.mxu0 %v1019
  %1042 = vmatprep.subr.bf16.mxu0 0
  %1043 = vmatpush1.bf16.msra.mxu0 %v1020
  %1044 = vmatprep.subr.bf16.mxu0 0
  %1045 = vmatpush1.bf16.msra.mxu0 %v1021
  %1046 = vmatprep.subr.bf16.mxu0 0
  %1047 = vmatpush1.bf16.msra.mxu0 0
  %1048 = vmatprep.subr.bf16.mxu0 0
  %1049 = vmatpush1.bf16.msra.mxu0 0
  %1050 = vmatprep.subr.bf16.mxu0 0
  %1051 = vmatpush1.bf16.msra.mxu0 0
  %1052 = vmatprep.subr.bf16.mxu0 0
  %1053 = vmatpush1.bf16.msra.mxu0 0
  %1054 = vmatprep.subr.bf16.mxu0 0
  %1055 = vmatpush1.bf16.msra.mxu0 0
  %1056 = vmatprep.subr.bf16.mxu0 0
  %1057 = vmatpush1.bf16.msra.mxu0 0
  %1058 = vmatprep.subr.bf16.mxu0 0
  %1059 = vmatpush1.bf16.msra.mxu0 0
  %1060 = vmatprep.subr.bf16.mxu0 0
  %1061 = vmatpush1.bf16.msra.mxu0 0
  %1062 = vmatprep.mubr.bf16.mxu0 0
  %1063 = vmatmul.mubr.bf16.gmra.mrb[0].mxu0 %v955
  %v1064 = vpop.f32.mrb[0].mxu0
  %v1065 = vadd.f32 %v980, %v1064
  %v1066 = vpop.f32.mrb[0].mxu0
  %v1067 = vpop.f32.mrb[0].mxu0
  %v1068 = vadd.f32 %v980, %v1067
  %v1069 = vpop.f32.mrb[0].mxu0
  %1070 = vmatprep.mubr.bf16.mxu0 0
  %1071 = vmatmul.mubr.bf16.gmra.mrb[0].mxu0 %v956
  %v1072 = vpop.f32.mrb[0].mxu0
  %v1073 = vadd.f32 %v980, %v1072
  %v1074 = vpop.f32.mrb[0].mxu0
  %v1075 = vpop.f32.mrb[0].mxu0
  %v1076 = vadd.f32 %v980, %v1075
  %v1077 = vpop.f32.mrb[0].mxu0
  %1078 = vmatprep.mubr.bf16.mxu0 0
  %1079 = vmatmul.mubr.bf16.gmra.mrb[0].mxu0 %v957
  %v1080 = vpop.f32.mrb[0].mxu0
  %v1081 = vadd.f32 %v980, %v1080
  %v1082 = vpop.f32.mrb[0].mxu0
  %v1083 = vpop.f32.mrb[0].mxu0
  %v1084 = vadd.f32 %v980, %v1083
  %v1085 = vpop.f32.mrb[0].mxu0
  %1086 = vmatprep.mubr.bf16.mxu0 0
  %1087 = vmatmul.mubr.bf16.gmra.mrb[0].mxu0 %v958
  %v1088 = vpop.f32.mrb[0].mxu0
  %v1089 = vadd.f32 %v980, %v1088
  %v1090 = vpop.f32.mrb[0].mxu0
  %v1091 = vpop.f32.mrb[0].mxu0
  %v1092 = vadd.f32 %v980, %v1091
  %v1093 = vpop.f32.mrb[0].mxu0
  %1094 = vdwg.mxu0
  %v1095 = vxor.u32 %v1065, 2147483648
  %v1096 = vxor.u32 %v1068, 2147483648
  %v1097 = vxor.u32 %v1073, 2147483648
  %v1098 = vxor.u32 %v1076, 2147483648
  %v1099 = vxor.u32 %v1081, 2147483648
  %v1100 = vxor.u32 %v1084, 2147483648
  %v1101 = vxor.u32 %v1089, 2147483648
  %v1102 = vxor.u32 %v1092, 2147483648
  %v1103 = vmul.f32 %v1095, 1.442695
  %v1104 = vpow.pop %v1103
  %v1105 = vmul.f32 %v1096, 1.442695
  %v1106 = vpow.pop %v1105
  %v1107 = vmul.f32 %v1097, 1.442695
  %v1108 = vpow.pop %v1107
  %v1109 = vmul.f32 %v1098, 1.442695
  %v1110 = vpow.pop %v1109
  %v1111 = vmul.f32 %v1099, 1.442695
  %v1112 = vpow.pop %v1111
  %v1113 = vmul.f32 %v1100, 1.442695
  %v1114 = vpow.pop %v1113
  %v1115 = vmul.f32 %v1101, 1.442695
  %v1116 = vpow.pop %v1115
  %v1117 = vmul.f32 %v1102, 1.442695
  %v1118 = vpow.pop %v1117
  %v1119 = vadd.f32 %v1104, 1.0
  %v1120 = vadd.f32 %v1106, 1.0
  %v1121 = vadd.f32 %v1108, 1.0
  %v1122 = vadd.f32 %v1110, 1.0
  %v1123 = vadd.f32 %v1112, 1.0
  %v1124 = vadd.f32 %v1114, 1.0
  %v1125 = vadd.f32 %v1116, 1.0
  %v1126 = vadd.f32 %v1118, 1.0
  %v1127 = vrcp.pop %v1119
  %v1128 = vmul.f32 1.0, %v1127
  %v1129 = vrcp.pop %v1120
  %v1130 = vmul.f32 1.0, %v1129
  %v1131 = vrcp.pop %v1121
  %v1132 = vmul.f32 1.0, %v1131
  %v1133 = vrcp.pop %v1122
  %v1134 = vmul.f32 1.0, %v1133
  %v1135 = vrcp.pop %v1123
  %v1136 = vmul.f32 1.0, %v1135
  %v1137 = vrcp.pop %v1124
  %v1138 = vmul.f32 1.0, %v1137
  %v1139 = vrcp.pop %v1125
  %v1140 = vmul.f32 1.0, %v1139
  %v1141 = vrcp.pop %v1126
  %v1142 = vmul.f32 1.0, %v1141
  %v1143 = vpack.c.bf16 %v1130, %v1128
  %v1144 = vpack.c.bf16 %v1134, %v1132
  %v1145 = vpack.c.bf16 %v1138, %v1136
  %v1146 = vpack.c.bf16 %v1142, %v1140
  %v1147 = vld [vmem:[%s7] sm:$0xf]
  %v1148 = vld [vmem:[%s7 + $0x4] sm:$0xf]
  %v1149 = vld [vmem:[%s7 + $0x8] sm:$0xf]
  %v1150 = vld [vmem:[%s7 + $0xc] sm:$0xf]
  %v1151 = vld [vmem:[%s7 + $0x10] sm:$0xf]
  %v1152 = vld [vmem:[%s7 + $0x14] sm:$0xf]
  %v1153 = vld [vmem:[%s7 + $0x18] sm:$0xf]
  %v1154 = vld [vmem:[%s7 + $0x1c] sm:$0xf]
  %v1155 = vld [vmem:[%s7 + $0x20] sm:$0xf]
  %v1156 = vld [vmem:[%s7 + $0x24] sm:$0xf]
  %v1157 = vld [vmem:[%s7 + $0x28] sm:$0xf]
  %v1158 = vld [vmem:[%s7 + $0x2c] sm:$0xf]
  %v1159 = vld [vmem:[%s7 + $0x30] sm:$0xf]
  %v1160 = vld [vmem:[%s7 + $0x34] sm:$0xf]
  %v1161 = vld [vmem:[%s7 + $0x38] sm:$0xf]
  %v1162 = vld [vmem:[%s7 + $0x3c] sm:$0xf]
  %v1163 = vld [vmem:[%s8] sm:$0x1]
  %v1165 = vlaneseq
  %v1166 = vshrl.u32 %v1165, 7
  %v1167 = vsub.s32 0, %v1166
  %v1168 = vrot.slane %v1163, %v1167
  %v1186 = vunpack.c.l.b16 %v1147
  %v1187 = vunpack.c.l.b16 %v1148
  %v1188 = vunpack.c.l.b16 %v1149
  %v1189 = vunpack.c.l.b16 %v1150
  %v1190 = vunpack.c.l.b16 %v1151
  %v1191 = vunpack.c.l.b16 %v1152
  %v1192 = vunpack.c.l.b16 %v1153
  %v1193 = vunpack.c.l.b16 %v1154
  %v1194 = vunpack.c.l.b16 %v1155
  %v1195 = vunpack.c.l.b16 %v1156
  %v1196 = vunpack.c.l.b16 %v1157
  %v1197 = vunpack.c.l.b16 %v1158
  %v1198 = vunpack.c.l.b16 %v1159
  %v1199 = vunpack.c.l.b16 %v1160
  %v1200 = vunpack.c.l.b16 %v1161
  %v1201 = vunpack.c.l.b16 %v1162
  %v1202 = vpack.c.b16 %v1187, %v1186
  %v1203 = vpack.c.b16 %v1189, %v1188
  %v1204 = vpack.c.b16 %v1191, %v1190
  %v1205 = vpack.c.b16 %v1193, %v1192
  %v1206 = vpack.c.b16 %v1195, %v1194
  %v1207 = vpack.c.b16 %v1197, %v1196
  %v1208 = vpack.c.b16 %v1199, %v1198
  %v1209 = vpack.c.b16 %v1201, %v1200
  %1218 = vmatprep.subr.bf16.mxu0 0
  %1219 = vmatpush1.bf16.msra.mxu0 %v1202
  %1220 = vmatprep.subr.bf16.mxu0 0
  %1221 = vmatpush1.bf16.msra.mxu0 %v1203
  %1222 = vmatprep.subr.bf16.mxu0 0
  %1223 = vmatpush1.bf16.msra.mxu0 %v1204
  %1224 = vmatprep.subr.bf16.mxu0 0
  %1225 = vmatpush1.bf16.msra.mxu0 %v1205
  %1226 = vmatprep.subr.bf16.mxu0 0
  %1227 = vmatpush1.bf16.msra.mxu0 %v1206
  %1228 = vmatprep.subr.bf16.mxu0 0
  %1229 = vmatpush1.bf16.msra.mxu0 %v1207
  %1230 = vmatprep.subr.bf16.mxu0 0
  %1231 = vmatpush1.bf16.msra.mxu0 %v1208
  %1232 = vmatprep.subr.bf16.mxu0 0
  %1233 = vmatpush1.bf16.msra.mxu0 %v1209
  %1234 = vmatprep.subr.bf16.mxu0 0
  %1235 = vmatpush1.bf16.msra.mxu0 0
  %1236 = vmatprep.subr.bf16.mxu0 0
  %1237 = vmatpush1.bf16.msra.mxu0 0
  %1238 = vmatprep.subr.bf16.mxu0 0
  %1239 = vmatpush1.bf16.msra.mxu0 0
  %1240 = vmatprep.subr.bf16.mxu0 0
  %1241 = vmatpush1.bf16.msra.mxu0 0
  %1242 = vmatprep.subr.bf16.mxu0 0
  %1243 = vmatpush1.bf16.msra.mxu0 0
  %1244 = vmatprep.subr.bf16.mxu0 0
  %1245 = vmatpush1.bf16.msra.mxu0 0
  %1246 = vmatprep.subr.bf16.mxu0 0
  %1247 = vmatpush1.bf16.msra.mxu0 0
  %1248 = vmatprep.subr.bf16.mxu0 0
  %1249 = vmatpush1.bf16.msra.mxu0 0
  %1250 = vmatprep.mubr.bf16.mxu0 0
  %1251 = vmatmul.mubr.bf16.gmra.mrb[0].mxu0 %v1143
  %v1252 = vpop.f32.mrb[0].mxu0
  %v1253 = vadd.f32 %v1168, %v1252
  %v1254 = vpop.f32.mrb[0].mxu0
  %v1255 = vpop.f32.mrb[0].mxu0
  %v1256 = vadd.f32 %v1168, %v1255
  %v1257 = vpop.f32.mrb[0].mxu0
  %1258 = vmatprep.mubr.bf16.mxu0 0
  %1259 = vmatmul.mubr.bf16.gmra.mrb[0].mxu0 %v1144
  %v1260 = vpop.f32.mrb[0].mxu0
  %v1261 = vadd.f32 %v1168, %v1260
  %v1262 = vpop.f32.mrb[0].mxu0
  %v1263 = vpop.f32.mrb[0].mxu0
  %v1264 = vadd.f32 %v1168, %v1263
  %v1265 = vpop.f32.mrb[0].mxu0
  %1266 = vmatprep.mubr.bf16.mxu0 0
  %1267 = vmatmul.mubr.bf16.gmra.mrb[0].mxu0 %v1145
  %v1268 = vpop.f32.mrb[0].mxu0
  %v1269 = vadd.f32 %v1168, %v1268
  %v1270 = vpop.f32.mrb[0].mxu0
  %v1271 = vpop.f32.mrb[0].mxu0
  %v1272 = vadd.f32 %v1168, %v1271
  %v1273 = vpop.f32.mrb[0].mxu0
  %1274 = vmatprep.mubr.bf16.mxu0 0
  %1275 = vmatmul.mubr.bf16.gmra.mrb[0].mxu0 %v1146
  %v1276 = vpop.f32.mrb[0].mxu0
  %v1277 = vadd.f32 %v1168, %v1276
  %v1278 = vpop.f32.mrb[0].mxu0
  %v1279 = vpop.f32.mrb[0].mxu0
  %v1280 = vadd.f32 %v1168, %v1279
  %v1281 = vpop.f32.mrb[0].mxu0
  %1282 = vdwg.mxu0
  %v1283 = vxor.u32 %v1253, 2147483648
  %v1284 = vxor.u32 %v1256, 2147483648
  %v1285 = vxor.u32 %v1261, 2147483648
  %v1286 = vxor.u32 %v1264, 2147483648
  %v1287 = vxor.u32 %v1269, 2147483648
  %v1288 = vxor.u32 %v1272, 2147483648
  %v1289 = vxor.u32 %v1277, 2147483648
  %v1290 = vxor.u32 %v1280, 2147483648
  %v1291 = vmul.f32 %v1283, 1.442695
  %v1292 = vpow.pop %v1291
  %v1293 = vmul.f32 %v1284, 1.442695
  %v1294 = vpow.pop %v1293
  %v1295 = vmul.f32 %v1285, 1.442695
  %v1296 = vpow.pop %v1295
  %v1297 = vmul.f32 %v1286, 1.442695
  %v1298 = vpow.pop %v1297
  %v1299 = vmul.f32 %v1287, 1.442695
  %v1300 = vpow.pop %v1299
  %v1301 = vmul.f32 %v1288, 1.442695
  %v1302 = vpow.pop %v1301
  %v1303 = vmul.f32 %v1289, 1.442695
  %v1304 = vpow.pop %v1303
  %v1305 = vmul.f32 %v1290, 1.442695
  %v1306 = vpow.pop %v1305
  %v1307 = vadd.f32 %v1292, 1.0
  %v1308 = vadd.f32 %v1294, 1.0
  %v1309 = vadd.f32 %v1296, 1.0
  %v1310 = vadd.f32 %v1298, 1.0
  %v1311 = vadd.f32 %v1300, 1.0
  %v1312 = vadd.f32 %v1302, 1.0
  %v1313 = vadd.f32 %v1304, 1.0
  %v1314 = vadd.f32 %v1306, 1.0
  %v1315 = vrcp.pop %v1307
  %v1316 = vmul.f32 1.0, %v1315
  %v1317 = vrcp.pop %v1308
  %v1318 = vmul.f32 1.0, %v1317
  %v1319 = vrcp.pop %v1309
  %v1320 = vmul.f32 1.0, %v1319
  %v1321 = vrcp.pop %v1310
  %v1322 = vmul.f32 1.0, %v1321
  %v1323 = vrcp.pop %v1311
  %v1324 = vmul.f32 1.0, %v1323
  %v1325 = vrcp.pop %v1312
  %v1326 = vmul.f32 1.0, %v1325
  %v1327 = vrcp.pop %v1313
  %v1328 = vmul.f32 1.0, %v1327
  %v1329 = vrcp.pop %v1314
  %v1330 = vmul.f32 1.0, %v1329
  %v1331 = vpack.c.bf16 %v1318, %v1316
  %v1332 = vpack.c.bf16 %v1322, %v1320
  %v1333 = vpack.c.bf16 %v1326, %v1324
  %v1334 = vpack.c.bf16 %v1330, %v1328
  %v1335 = vld [vmem:[%s9] sm:$0xf]
  %v1336 = vld [vmem:[%s9 + $0x4] sm:$0xf]
  %v1337 = vld [vmem:[%s9 + $0x8] sm:$0xf]
  %v1338 = vld [vmem:[%s9 + $0xc] sm:$0xf]
  %v1339 = vld [vmem:[%s9 + $0x10] sm:$0xf]
  %v1340 = vld [vmem:[%s9 + $0x14] sm:$0xf]
  %v1341 = vld [vmem:[%s9 + $0x18] sm:$0xf]
  %v1342 = vld [vmem:[%s9 + $0x1c] sm:$0xf]
  %v1343 = vld [vmem:[%s9 + $0x20] sm:$0xf]
  %v1344 = vld [vmem:[%s9 + $0x24] sm:$0xf]
  %v1345 = vld [vmem:[%s9 + $0x28] sm:$0xf]
  %v1346 = vld [vmem:[%s9 + $0x2c] sm:$0xf]
  %v1347 = vld [vmem:[%s9 + $0x30] sm:$0xf]
  %v1348 = vld [vmem:[%s9 + $0x34] sm:$0xf]
  %v1349 = vld [vmem:[%s9 + $0x38] sm:$0xf]
  %v1350 = vld [vmem:[%s9 + $0x3c] sm:$0xf]
  %v1351 = vld [vmem:[%s10] sm:$0x1]
  %v1353 = vlaneseq
  %v1354 = vshrl.u32 %v1353, 7
  %v1355 = vsub.s32 0, %v1354
  %v1356 = vrot.slane %v1351, %v1355
  %v1374 = vunpack.c.l.b16 %v1335
  %v1375 = vunpack.c.l.b16 %v1336
  %v1376 = vunpack.c.l.b16 %v1337
  %v1377 = vunpack.c.l.b16 %v1338
  %v1378 = vunpack.c.l.b16 %v1339
  %v1379 = vunpack.c.l.b16 %v1340
  %v1380 = vunpack.c.l.b16 %v1341
  %v1381 = vunpack.c.l.b16 %v1342
  %v1382 = vunpack.c.l.b16 %v1343
  %v1383 = vunpack.c.l.b16 %v1344
  %v1384 = vunpack.c.l.b16 %v1345
  %v1385 = vunpack.c.l.b16 %v1346
  %v1386 = vunpack.c.l.b16 %v1347
  %v1387 = vunpack.c.l.b16 %v1348
  %v1388 = vunpack.c.l.b16 %v1349
  %v1389 = vunpack.c.l.b16 %v1350
  %v1390 = vpack.c.b16 %v1375, %v1374
  %v1391 = vpack.c.b16 %v1377, %v1376
  %v1392 = vpack.c.b16 %v1379, %v1378
  %v1393 = vpack.c.b16 %v1381, %v1380
  %v1394 = vpack.c.b16 %v1383, %v1382
  %v1395 = vpack.c.b16 %v1385, %v1384
  %v1396 = vpack.c.b16 %v1387, %v1386
  %v1397 = vpack.c.b16 %v1389, %v1388
  %1406 = vmatprep.subr.bf16.mxu0 0
  %1407 = vmatpush1.bf16.msra.mxu0 %v1390
  %1408 = vmatprep.subr.bf16.mxu0 0
  %1409 = vmatpush1.bf16.msra.mxu0 %v1391
  %1410 = vmatprep.subr.bf16.mxu0 0
  %1411 = vmatpush1.bf16.msra.mxu0 %v1392
  %1412 = vmatprep.subr.bf16.mxu0 0
  %1413 = vmatpush1.bf16.msra.mxu0 %v1393
  %1414 = vmatprep.subr.bf16.mxu0 0
  %1415 = vmatpush1.bf16.msra.mxu0 %v1394
  %1416 = vmatprep.subr.bf16.mxu0 0
  %1417 = vmatpush1.bf16.msra.mxu0 %v1395
  %1418 = vmatprep.subr.bf16.mxu0 0
  %1419 = vmatpush1.bf16.msra.mxu0 %v1396
  %1420 = vmatprep.subr.bf16.mxu0 0
  %1421 = vmatpush1.bf16.msra.mxu0 %v1397
  %1422 = vmatprep.subr.bf16.mxu0 0
  %1423 = vmatpush1.bf16.msra.mxu0 0
  %1424 = vmatprep.subr.bf16.mxu0 0
  %1425 = vmatpush1.bf16.msra.mxu0 0
  %1426 = vmatprep.subr.bf16.mxu0 0
  %1427 = vmatpush1.bf16.msra.mxu0 0
  %1428 = vmatprep.subr.bf16.mxu0 0
  %1429 = vmatpush1.bf16.msra.mxu0 0
  %1430 = vmatprep.subr.bf16.mxu0 0
  %1431 = vmatpush1.bf16.msra.mxu0 0
  %1432 = vmatprep.subr.bf16.mxu0 0
  %1433 = vmatpush1.bf16.msra.mxu0 0
  %1434 = vmatprep.subr.bf16.mxu0 0
  %1435 = vmatpush1.bf16.msra.mxu0 0
  %1436 = vmatprep.subr.bf16.mxu0 0
  %1437 = vmatpush1.bf16.msra.mxu0 0
  %1438 = vmatprep.mubr.bf16.mxu0 0
  %1439 = vmatmul.mubr.bf16.gmra.mrb[0].mxu0 %v1331
  %v1440 = vpop.f32.mrb[0].mxu0
  %v1441 = vadd.f32 %v1356, %v1440
  %v1442 = vpop.f32.mrb[0].mxu0
  %v1443 = vpop.f32.mrb[0].mxu0
  %v1444 = vadd.f32 %v1356, %v1443
  %v1445 = vpop.f32.mrb[0].mxu0
  %1446 = vmatprep.mubr.bf16.mxu0 0
  %1447 = vmatmul.mubr.bf16.gmra.mrb[0].mxu0 %v1332
  %v1448 = vpop.f32.mrb[0].mxu0
  %v1449 = vadd.f32 %v1356, %v1448
  %v1450 = vpop.f32.mrb[0].mxu0
  %v1451 = vpop.f32.mrb[0].mxu0
  %v1452 = vadd.f32 %v1356, %v1451
  %v1453 = vpop.f32.mrb[0].mxu0
  %1454 = vmatprep.mubr.bf16.mxu0 0
  %1455 = vmatmul.mubr.bf16.gmra.mrb[0].mxu0 %v1333
  %v1456 = vpop.f32.mrb[0].mxu0
  %v1457 = vadd.f32 %v1356, %v1456
  %v1458 = vpop.f32.mrb[0].mxu0
  %v1459 = vpop.f32.mrb[0].mxu0
  %v1460 = vadd.f32 %v1356, %v1459
  %v1461 = vpop.f32.mrb[0].mxu0
  %1462 = vmatprep.mubr.bf16.mxu0 0
  %1463 = vmatmul.mubr.bf16.gmra.mrb[0].mxu0 %v1334
  %v1464 = vpop.f32.mrb[0].mxu0
  %v1465 = vadd.f32 %v1356, %v1464
  %v1466 = vpop.f32.mrb[0].mxu0
  %v1467 = vpop.f32.mrb[0].mxu0
  %v1468 = vadd.f32 %v1356, %v1467
  %v1469 = vpop.f32.mrb[0].mxu0
  %1470 = vdwg.mxu0
  %v1471 = vxor.u32 %v1441, 2147483648
  %v1472 = vxor.u32 %v1444, 2147483648
  %v1473 = vxor.u32 %v1449, 2147483648
  %v1474 = vxor.u32 %v1452, 2147483648
  %v1475 = vxor.u32 %v1457, 2147483648
  %v1476 = vxor.u32 %v1460, 2147483648
  %v1477 = vxor.u32 %v1465, 2147483648
  %v1478 = vxor.u32 %v1468, 2147483648
  %v1479 = vmul.f32 %v1471, 1.442695
  %v1480 = vpow.pop %v1479
  %v1481 = vmul.f32 %v1472, 1.442695
  %v1482 = vpow.pop %v1481
  %v1483 = vmul.f32 %v1473, 1.442695
  %v1484 = vpow.pop %v1483
  %v1485 = vmul.f32 %v1474, 1.442695
  %v1486 = vpow.pop %v1485
  %v1487 = vmul.f32 %v1475, 1.442695
  %v1488 = vpow.pop %v1487
  %v1489 = vmul.f32 %v1476, 1.442695
  %v1490 = vpow.pop %v1489
  %v1491 = vmul.f32 %v1477, 1.442695
  %v1492 = vpow.pop %v1491
  %v1493 = vmul.f32 %v1478, 1.442695
  %v1494 = vpow.pop %v1493
  %v1495 = vadd.f32 %v1480, 1.0
  %v1496 = vadd.f32 %v1482, 1.0
  %v1497 = vadd.f32 %v1484, 1.0
  %v1498 = vadd.f32 %v1486, 1.0
  %v1499 = vadd.f32 %v1488, 1.0
  %v1500 = vadd.f32 %v1490, 1.0
  %v1501 = vadd.f32 %v1492, 1.0
  %v1502 = vadd.f32 %v1494, 1.0
  %v1503 = vrcp.pop %v1495
  %v1504 = vmul.f32 1.0, %v1503
  %v1505 = vrcp.pop %v1496
  %v1506 = vmul.f32 1.0, %v1505
  %v1507 = vrcp.pop %v1497
  %v1508 = vmul.f32 1.0, %v1507
  %v1509 = vrcp.pop %v1498
  %v1510 = vmul.f32 1.0, %v1509
  %v1511 = vrcp.pop %v1499
  %v1512 = vmul.f32 1.0, %v1511
  %v1513 = vrcp.pop %v1500
  %v1514 = vmul.f32 1.0, %v1513
  %v1515 = vrcp.pop %v1501
  %v1516 = vmul.f32 1.0, %v1515
  %v1517 = vrcp.pop %v1502
  %v1518 = vmul.f32 1.0, %v1517
  %v1519 = vpack.c.bf16 %v1506, %v1504
  %v1520 = vpack.c.bf16 %v1510, %v1508
  %v1521 = vpack.c.bf16 %v1514, %v1512
  %v1522 = vpack.c.bf16 %v1518, %v1516
  %v1523 = vld [vmem:[%s11] sm:$0xf]
  %v1524 = vld [vmem:[%s11 + $0x4] sm:$0xf]
  %v1525 = vld [vmem:[%s11 + $0x8] sm:$0xf]
  %v1526 = vld [vmem:[%s11 + $0xc] sm:$0xf]
  %v1527 = vld [vmem:[%s11 + $0x10] sm:$0xf]
  %v1528 = vld [vmem:[%s11 + $0x14] sm:$0xf]
  %v1529 = vld [vmem:[%s11 + $0x18] sm:$0xf]
  %v1530 = vld [vmem:[%s11 + $0x1c] sm:$0xf]
  %v1531 = vld [vmem:[%s11 + $0x20] sm:$0xf]
  %v1532 = vld [vmem:[%s11 + $0x24] sm:$0xf]
  %v1533 = vld [vmem:[%s11 + $0x28] sm:$0xf]
  %v1534 = vld [vmem:[%s11 + $0x2c] sm:$0xf]
  %v1535 = vld [vmem:[%s11 + $0x30] sm:$0xf]
  %v1536 = vld [vmem:[%s11 + $0x34] sm:$0xf]
  %v1537 = vld [vmem:[%s11 + $0x38] sm:$0xf]
  %v1538 = vld [vmem:[%s11 + $0x3c] sm:$0xf]
  %v1539 = vld [vmem:[%s12] sm:$0x1]
  %v1541 = vlaneseq
  %v1542 = vshrl.u32 %v1541, 7
  %v1543 = vsub.s32 0, %v1542
  %v1544 = vrot.slane %v1539, %v1543
  %v1562 = vunpack.c.l.b16 %v1523
  %v1563 = vunpack.c.l.b16 %v1524
  %v1564 = vunpack.c.l.b16 %v1525
  %v1565 = vunpack.c.l.b16 %v1526
  %v1566 = vunpack.c.l.b16 %v1527
  %v1567 = vunpack.c.l.b16 %v1528
  %v1568 = vunpack.c.l.b16 %v1529
  %v1569 = vunpack.c.l.b16 %v1530
  %v1570 = vunpack.c.l.b16 %v1531
  %v1571 = vunpack.c.l.b16 %v1532
  %v1572 = vunpack.c.l.b16 %v1533
  %v1573 = vunpack.c.l.b16 %v1534
  %v1574 = vunpack.c.l.b16 %v1535
  %v1575 = vunpack.c.l.b16 %v1536
  %v1576 = vunpack.c.l.b16 %v1537
  %v1577 = vunpack.c.l.b16 %v1538
  %v1578 = vpack.c.b16 %v1563, %v1562
  %v1579 = vpack.c.b16 %v1565, %v1564
  %v1580 = vpack.c.b16 %v1567, %v1566
  %v1581 = vpack.c.b16 %v1569, %v1568
  %v1582 = vpack.c.b16 %v1571, %v1570
  %v1583 = vpack.c.b16 %v1573, %v1572
  %v1584 = vpack.c.b16 %v1575, %v1574
  %v1585 = vpack.c.b16 %v1577, %v1576
  %1594 = vmatprep.subr.bf16.mxu0 0
  %1595 = vmatpush1.bf16.msra.mxu0 %v1578
  %1596 = vmatprep.subr.bf16.mxu0 0
  %1597 = vmatpush1.bf16.msra.mxu0 %v1579
  %1598 = vmatprep.subr.bf16.mxu0 0
  %1599 = vmatpush1.bf16.msra.mxu0 %v1580
  %1600 = vmatprep.subr.bf16.mxu0 0
  %1601 = vmatpush1.bf16.msra.mxu0 %v1581
  %1602 = vmatprep.subr.bf16.mxu0 0
  %1603 = vmatpush1.bf16.msra.mxu0 %v1582
  %1604 = vmatprep.subr.bf16.mxu0 0
  %1605 = vmatpush1.bf16.msra.mxu0 %v1583
  %1606 = vmatprep.subr.bf16.mxu0 0
  %1607 = vmatpush1.bf16.msra.mxu0 %v1584
  %1608 = vmatprep.subr.bf16.mxu0 0
  %1609 = vmatpush1.bf16.msra.mxu0 %v1585
  %1610 = vmatprep.subr.bf16.mxu0 0
  %1611 = vmatpush1.bf16.msra.mxu0 0
  %1612 = vmatprep.subr.bf16.mxu0 0
  %1613 = vmatpush1.bf16.msra.mxu0 0
  %1614 = vmatprep.subr.bf16.mxu0 0
  %1615 = vmatpush1.bf16.msra.mxu0 0
  %1616 = vmatprep.subr.bf16.mxu0 0
  %1617 = vmatpush1.bf16.msra.mxu0 0
  %1618 = vmatprep.subr.bf16.mxu0 0
  %1619 = vmatpush1.bf16.msra.mxu0 0
  %1620 = vmatprep.subr.bf16.mxu0 0
  %1621 = vmatpush1.bf16.msra.mxu0 0
  %1622 = vmatprep.subr.bf16.mxu0 0
  %1623 = vmatpush1.bf16.msra.mxu0 0
  %1624 = vmatprep.subr.bf16.mxu0 0
  %1625 = vmatpush1.bf16.msra.mxu0 0
  %1626 = vmatprep.mubr.bf16.mxu0 0
  %1627 = vmatmul.mubr.bf16.gmra.mrb[0].mxu0 %v1519
  %v1628 = vpop.f32.mrb[0].mxu0
  %v1629 = vadd.f32 %v1544, %v1628
  %v1630 = vpop.f32.mrb[0].mxu0
  %v1631 = vpop.f32.mrb[0].mxu0
  %v1632 = vadd.f32 %v1544, %v1631
  %v1633 = vpop.f32.mrb[0].mxu0
  %1634 = vmatprep.mubr.bf16.mxu0 0
  %1635 = vmatmul.mubr.bf16.gmra.mrb[0].mxu0 %v1520
  %v1636 = vpop.f32.mrb[0].mxu0
  %v1637 = vadd.f32 %v1544, %v1636
  %v1638 = vpop.f32.mrb[0].mxu0
  %v1639 = vpop.f32.mrb[0].mxu0
  %v1640 = vadd.f32 %v1544, %v1639
  %v1641 = vpop.f32.mrb[0].mxu0
  %1642 = vmatprep.mubr.bf16.mxu0 0
  %1643 = vmatmul.mubr.bf16.gmra.mrb[0].mxu0 %v1521
  %v1644 = vpop.f32.mrb[0].mxu0
  %v1645 = vadd.f32 %v1544, %v1644
  %v1646 = vpop.f32.mrb[0].mxu0
  %v1647 = vpop.f32.mrb[0].mxu0
  %v1648 = vadd.f32 %v1544, %v1647
  %v1649 = vpop.f32.mrb[0].mxu0
  %1650 = vmatprep.mubr.bf16.mxu0 0
  %1651 = vmatmul.mubr.bf16.gmra.mrb[0].mxu0 %v1522
  %v1652 = vpop.f32.mrb[0].mxu0
  %v1653 = vadd.f32 %v1544, %v1652
  %v1654 = vpop.f32.mrb[0].mxu0
  %v1655 = vpop.f32.mrb[0].mxu0
  %v1656 = vadd.f32 %v1544, %v1655
  %v1657 = vpop.f32.mrb[0].mxu0
  %1658 = vdwg.mxu0
  %v1659 = vmax.f32 %v1629, 0.0
  %v1660 = vmax.f32 %v1632, 0.0
  %v1661 = vmax.f32 %v1637, 0.0
  %v1662 = vmax.f32 %v1640, 0.0
  %v1663 = vmax.f32 %v1645, 0.0
  %v1664 = vmax.f32 %v1648, 0.0
  %v1665 = vmax.f32 %v1653, 0.0
  %v1666 = vmax.f32 %v1656, 0.0
  %1667 = vst [vmem:[%s13] sm:$0xff] %v1659
  %1668 = vst [vmem:[%s13 + $0x8] sm:$0xff] %v1660
  %1669 = vst [vmem:[%s13 + $0x10] sm:$0xff] %v1661
  %1670 = vst [vmem:[%s13 + $0x18] sm:$0xff] %v1662
  %1671 = vst [vmem:[%s13 + $0x20] sm:$0xff] %v1663
  %1672 = vst [vmem:[%s13 + $0x28] sm:$0xff] %v1664
  %1673 = vst [vmem:[%s13 + $0x30] sm:$0xff] %v1665
  %1674 = vst [vmem:[%s13 + $0x38] sm:$0xff] %v1666
  // Predicated region
  $region54: #{neural_network_forward.1} parent=0 // pred_check
    _
  $region55: #{neural_network_forward.1} parent=0 // pred_check_branch
    %1676 = sbr.rel (0) target = $region57
  $region56: #{neural_network_forward.1} parent=0 // pred_region
    _
  $region57: #{neural_network_forward.1} parent=0 // pred_fallthru
    _
  // Predicated region
  $region58: #{neural_network_forward.1} parent=0 // pred_check
    _
  $region59: #{neural_network_forward.1} parent=0 // pred_check_branch
    %1678 = sbr.rel (0) target = $region61
  $region60: #{neural_network_forward.1} parent=0 // pred_region
    _
  $region61: #{neural_network_forward.1} parent=0 // pred_fallthru
    _

</llo_original>
